<compile_context>
chip_gen: v7x
topology: tpu7x:2x2x1
jax: 0.10.0
libtpu: 0.0.40
codegen_flags: <defaults>
</compile_context>

<pallas_src>
import functools

import jax
import jax.numpy as jnp
from jax.experimental import pallas as pl
from jax.experimental.pallas import tpu as pltpu


# ----------------------------- Pallas kernel --------------------------------
def motion_predictor_kernel(x_flat_ref, w_ih_ref, w_hh_ref, w_cat_ref,
                            b_i_ref, b_hn_ref, c_ih_ref, fc_b_ref,
                            out_ref, *,
                            batch, pad_b, s_enc, t_dec, hidden, d_in, seg):
    """Full encoder + decoder recurrence, resident in VMEM.

    x_flat_ref : ((s_enc+1)*pad_b, D) encoder frames (time-major) + decoder frame 0,
                 each step padded to pad_b sublane-aligned rows (only first `batch` valid)
    w_ih_ref   : (D, 3H)  fused input->hidden weights, gate order (r, z, n)
    w_hh_ref   : (H, 3H)  fused hidden->hidden weights
    w_cat_ref  : (H, 3*seg) lane-padded [w_hh | fc_w@w_ih | fc_w]
    b_i_ref    : (1, 3H)  fused input bias [b_ir+b_hr, b_iz+b_hz, b_in]
    b_hn_ref   : (1, H)   hidden bias of n gate (stays inside r*(...))
    c_ih_ref   : (1, 3H)  fc_b @ w_ih (xi-recurrence constant)
    fc_b_ref   : (1, D)   fc1 bias
    out_ref    : (t_dec*batch, D) outputs, time-major flattened
    """
    H = hidden

    # Hoist all weight / bias loads (and their broadcasts) off the recurrence.
    w_ih = w_ih_ref[...]                                     # (D, 3H)
    w_hh = w_hh_ref[...]                                     # (H, 3H)
    w_cat = w_cat_ref[...]                                   # (H, 3*seg)
    b_i = b_i_ref[...]                                       # (1, 3H)
    b_hn = jnp.broadcast_to(b_hn_ref[...], (batch, H))       # (B, H)
    c_ih = jnp.broadcast_to(c_ih_ref[...], (batch, 3 * H))   # (B, 3H)
    fc_b = jnp.broadcast_to(fc_b_ref[...], (batch, d_in))    # (B, D)

    x_all = x_flat_ref[...]

    # One batched MXU op projects every encoder frame AND decoder frame 0 through the
    # fused input weights -- all x-projections are off the serial chain.
    xi_all = jnp.dot(x_all, w_ih, preferred_element_type=jnp.float32) + b_i

    def gru_gates(xi, hh, h):
        # Fused sigmoid over the contiguous (r, z) lanes -> one EUP push.
        rz = jax.nn.sigmoid(xi[:, :2 * H] + hh[:, :2 * H])
        r = rz[:, :H]
        z = rz[:, H:]
        n = jnp.tanh(xi[:, 2 * H:] + r * (hh[:, 2 * H:] + b_hn))
        return (1.0 - z) * n + z * h

    # ---- encoder: hh carried "post-update" so the final iteration's matmul already
    #      provides the hh needed by decoder step 0. h0 = 0 => hh0 = 0 (no matmul).
    h = jnp.zeros((batch, H), jnp.float32)
    hh = jnp.zeros((batch, 3 * H), jnp.float32)
    for i in range(s_enc):                                   # static -> fully unrolled
        xi = xi_all[i * pad_b:i * pad_b + batch, :]
        h = gru_gates(xi, hh, h)
        hh = jnp.dot(h, w_hh, preferred_element_type=jnp.float32)
    # F.dropout is identity in eval mode.

    # ---- decoder: exactly one fused MXU push per step: h @ [w_hh | W_fc_ih | fc_w].
    xi = xi_all[s_enc * pad_b:s_enc * pad_b + batch, :]      # projection of dec frame 0
    inp = x_all[s_enc * pad_b:s_enc * pad_b + batch, :]      # raw dec frame 0
    outs = []
    for i in range(t_dec):                                   # static -> fully unrolled
        h = gru_gates(xi, hh, h)
        y = jnp.dot(h, w_cat, preferred_element_type=jnp.float32)   # (B, 3*seg)
        hh = y[:, 0:3 * H]                                   # h @ w_hh   (next step's hh)
        out = inp + y[:, 2 * seg:2 * seg + d_in] + fc_b      # inp + h@fc_w + fc_b
        outs.append(out)
        if i + 1 < t_dec:
            xi = xi + y[:, seg:seg + 3 * H] + c_ih           # == out @ w_ih + b_i
            inp = out

    # Single dense store at the end instead of t_dec interleaved masked stores.
    out_ref[...] = jnp.concatenate(outs, axis=0).astype(out_ref.dtype)


# ------------------------- Parameter preparation ------------------------------
def prepare_params(w_ih, w_hh, b_ih, b_hh, fc_w, fc_b):
    """Fuse GRU gate weights/biases and pre-multiply the fc->input-projection product.

    Inputs follow the reference layout: w_ih (3, D, H), w_hh (3, H, H), b_* (3, 1, H),
    gate order (r, z, n), already transposed to (in_features, out_features);
    fc_w (H, D), fc_b (1, D).
    """
    f32 = jnp.float32
    w_ih_f = jnp.concatenate([w_ih[0], w_ih[1], w_ih[2]], axis=1).astype(f32)   # (D, 3H)
    w_hh_f = jnp.concatenate([w_hh[0], w_hh[1], w_hh[2]], axis=1).astype(f32)   # (H, 3H)
    b_i_f = jnp.concatenate([b_ih[0] + b_hh[0],                                 # r
                             b_ih[1] + b_hh[1],                                 # z
                             b_ih[2]], axis=1).astype(f32)                      # n (input)
    b_hn = b_hh[2].astype(f32)                                                  # (1, H)
    fc_w = fc_w.astype(f32)
    fc_b = fc_b.astype(f32)

    hp = jax.lax.Precision.HIGHEST
    w_fc_ih = jnp.dot(fc_w, w_ih_f, precision=hp)                               # (H, 3H)
    c_ih = jnp.dot(fc_b, w_ih_f, precision=hp)                                  # (1, 3H)

    # Lane-pad each segment to a 128-lane boundary so the in-kernel slices of the fused
    # matmul result all start on lane-tile boundaries (no cross-tile lane shifts).
    h3 = w_hh_f.shape[1]
    d = fc_w.shape[1]
    seg = ((max(h3, d) + 127) // 128) * 128

    def pad_lanes(a):
        return jnp.pad(a, ((0, 0), (0, seg - a.shape[1])))

    w_cat = jnp.concatenate(
        [pad_lanes(w_hh_f), pad_lanes(w_fc_ih), pad_lanes(fc_w)], axis=1)       # (H, 3*seg)

    return w_ih_f, w_hh_f, w_cat, b_i_f, b_hn, c_ih, fc_b


# ------------------------------- Wrapper -------------------------------------
def motion_predictor_forward(encoder_inputs, decoder_inputs, fused_params):
    """encoder_inputs: (B, S_enc, D), decoder_inputs: (B, T, D) -> (B, T, D)."""
    w_ih_f, w_hh_f, w_cat, b_i_f, b_hn, c_ih, fc_b = fused_params
    b, s_enc, d = encoder_inputs.shape
    t_dec = decoder_inputs.shape[1]
    hidden = w_hh_f.shape[0]
    seg = w_cat.shape[1] // 3
    pad_b = ((b + 7) // 8) * 8            # sublane-align every per-step row block

    # Time-major, one sublane-aligned row block per step; the last block is decoder
    # frame 0 (the only decoder frame ever consumed: loop_function(prev, i) = prev).
    enc_tm = jnp.transpose(encoder_inputs, (1, 0, 2)).astype(jnp.float32)       # (S, B, D)
    dec0 = decoder_inputs[:, 0, :].astype(jnp.float32)[None]                    # (1, B, D)
    x_all = jnp.concatenate([enc_tm, dec0], axis=0)                             # (S+1, B, D)
    x_pad = jnp.pad(x_all, ((0, 0), (0, pad_b - b), (0, 0)))                    # (S+1, pad_b, D)
    x_flat = x_pad.reshape((s_enc + 1) * pad_b, d)

    kernel = functools.partial(
        motion_predictor_kernel,
        batch=b, pad_b=pad_b, s_enc=s_enc, t_dec=t_dec,
        hidden=hidden, d_in=d, seg=seg)

    vmem = pl.BlockSpec(memory_space=pltpu.MemorySpace.VMEM)

    steps = s_enc + t_dec
    flops = (2 * x_flat.shape[0] * d * 3 * hidden          # batched input projection
             + 2 * s_enc * b * hidden * 3 * hidden          # encoder hh matmuls
             + 2 * t_dec * b * hidden * 3 * seg)            # fused decoder matmuls
    transcendentals = steps * b * 3 * hidden
    bytes_accessed = 4 * (x_flat.size + w_ih_f.size + w_hh_f.size + w_cat.size
                          + b_i_f.size + b_hn.size + c_ih.size + fc_b.size
                          + t_dec * b * d)

    out_flat = pl.pallas_call(
        kernel,
        out_shape=jax.ShapeDtypeStruct((t_dec * b, d), jnp.float32),
        in_specs=[vmem] * 8,
        out_specs=vmem,
        cost_estimate=pl.CostEstimate(flops=int(flops),
                                      transcendentals=int(transcendentals),
                                      bytes_accessed=int(bytes_accessed)),
    )(x_flat, w_ih_f, w_hh_f, w_cat, b_i_f, b_hn, c_ih, fc_b)

    return jnp.transpose(out_flat.reshape(t_dec, b, d), (1, 0, 2))   # (B, T, D)


# ------------------------- Pure-JAX reference --------------------------------
def motion_predictor_reference(encoder_inputs, decoder_inputs, params):
    w_ih, w_hh, b_ih, b_hh, fc_w, fc_b = params

    def gru_step(x, h):
        i_r = x @ w_ih[0] + b_ih[0]
        i_z = x @ w_ih[1] + b_ih[1]
        i_n = x @ w_ih[2] + b_ih[2]
        h_r = h @ w_hh[0] + b_hh[0]
        h_z = h @ w_hh[1] + b_hh[1]
        h_n = h @ w_hh[2] + b_hh[2]
        r = jax.nn.sigmoid(i_r + h_r)
        z = jax.nn.sigmoid(i_z + h_z)
        n = jnp.tanh(i_n + r * h_n)
        return (1.0 - z) * n + z * h

    batch = encoder_inputs.shape[0]
    hidden = w_hh.shape[1]
    state = jnp.zeros((batch, hidden), jnp.float32)
    for i in range(encoder_inputs.shape[1]):
        state = gru_step(encoder_inputs[:, i, :], state)

    outputs = []
    prev = None
    for i in range(decoder_inputs.shape[1]):
        inp = decoder_inputs[:, i, :] if prev is None else prev
        state = gru_step(inp, state)
        out = inp + state @ fc_w + fc_b
        outputs.append(out)
        prev = out
    return jnp.stack(outputs, axis=1)  # (B, T, D)


# --------------------------------- Main ---------------------------------------
if __name__ == "__main__":
    # Module hyperparameters (small, deterministic).
    number_of_actions = 10
    human_dofs = 54
    input_size = human_dofs + number_of_actions  # 64
    source_seq_len = 8                           # encoder sees source_seq_len - 1 = 7 frames
    target_seq_len = 8
    rnn_size = 32
    batch = 2

    key = jax.random.PRNGKey(0)
    k_enc, k_dec, k_wih, k_whh, k_bih, k_bhh, k_fcw, k_fcb = jax.random.split(key, 8)

    # Deterministic parameter init (uniform +-1/sqrt(rnn_size), like PyTorch defaults).
    scale = 1.0 / jnp.sqrt(jnp.float32(rnn_size))
    w_ih = jax.random.uniform(k_wih, (3, input_size, rnn_size), jnp.float32, -scale, scale)
    w_hh = jax.random.uniform(k_whh, (3, rnn_size, rnn_size), jnp.float32, -scale, scale)
    b_ih = jax.random.uniform(k_bih, (3, 1, rnn_size), jnp.float32, -scale, scale)
    b_hh = jax.random.uniform(k_bhh, (3, 1, rnn_size), jnp.float32, -scale, scale)
    fc_w = jax.random.uniform(k_fcw, (rnn_size, input_size), jnp.float32, -scale, scale)
    fc_b = jax.random.uniform(k_fcb, (1, input_size), jnp.float32, -scale, scale)
    raw_params = (w_ih, w_hh, b_ih, b_hh, fc_w, fc_b)
    fused_params = prepare_params(*raw_params)

    encoder_inputs = jax.random.normal(k_enc, (batch, source_seq_len - 1, input_size), jnp.float32)
    decoder_inputs = jax.random.normal(k_dec, (batch, target_seq_len, input_size), jnp.float32)

    fwd = jax.jit(motion_predictor_forward)
    out = fwd(encoder_inputs, decoder_inputs, fused_params)
    out = jax.block_until_ready(out)

    ref = motion_predictor_reference(encoder_inputs, decoder_inputs, raw_params)
    assert out.shape == (batch, target_seq_len, input_size), out.shape
    assert jnp.allclose(out, ref, atol=1e-4, rtol=1e-4), \
        f"max abs err = {jnp.max(jnp.abs(out - ref))}"

    print("KERNEL_OK")
</pallas_src>

<mosaic_0001>
module attributes {stable_mosaic.version = 11 : i64} {
  func.func @motion_predictor_kernel(%arg0: memref<64x64xf32, #tpu.memory_space<vmem>>, %arg1: memref<64x96xf32, #tpu.memory_space<vmem>>, %arg2: memref<32x96xf32, #tpu.memory_space<vmem>>, %arg3: memref<32x384xf32, #tpu.memory_space<vmem>>, %arg4: memref<1x96xf32, #tpu.memory_space<vmem>>, %arg5: memref<1x32xf32, #tpu.memory_space<vmem>>, %arg6: memref<1x96xf32, #tpu.memory_space<vmem>>, %arg7: memref<1x64xf32, #tpu.memory_space<vmem>>, %arg8: memref<16x64xf32, #tpu.memory_space<vmem>>) attributes {dimension_semantics = [], scalar_prefetch = 0 : i64, scratch_operands = 0 : i64, tpu.core_type = #tpu.core_type<tc>} {
    %c0 = arith.constant 0 : index
    %c0_0 = arith.constant 0 : index
    %0 = vector.load %arg1[%c0, %c0_0] : memref<64x96xf32, #tpu.memory_space<vmem>>, vector<64x96xf32>
    %c0_1 = arith.constant 0 : index
    %c0_2 = arith.constant 0 : index
    %1 = vector.load %arg2[%c0_1, %c0_2] : memref<32x96xf32, #tpu.memory_space<vmem>>, vector<32x96xf32>
    %c0_3 = arith.constant 0 : index
    %c0_4 = arith.constant 0 : index
    %2 = vector.load %arg3[%c0_3, %c0_4] : memref<32x384xf32, #tpu.memory_space<vmem>>, vector<32x384xf32>
    %c0_5 = arith.constant 0 : index
    %c0_6 = arith.constant 0 : index
    %3 = vector.load %arg4[%c0_5, %c0_6] : memref<1x96xf32, #tpu.memory_space<vmem>>, vector<1x96xf32>
    %c0_7 = arith.constant 0 : index
    %c0_8 = arith.constant 0 : index
    %4 = vector.load %arg5[%c0_7, %c0_8] : memref<1x32xf32, #tpu.memory_space<vmem>>, vector<1x32xf32>
    %5 = vector.shape_cast %4 : vector<1x32xf32> to vector<1x32xf32>
    %6 = vector.broadcast %5 : vector<1x32xf32> to vector<2x32xf32>
    %c0_9 = arith.constant 0 : index
    %c0_10 = arith.constant 0 : index
    %7 = vector.load %arg6[%c0_9, %c0_10] : memref<1x96xf32, #tpu.memory_space<vmem>>, vector<1x96xf32>
    %8 = vector.shape_cast %7 : vector<1x96xf32> to vector<1x96xf32>
    %9 = vector.broadcast %8 : vector<1x96xf32> to vector<2x96xf32>
    %c0_11 = arith.constant 0 : index
    %c0_12 = arith.constant 0 : index
    %10 = vector.load %arg7[%c0_11, %c0_12] : memref<1x64xf32, #tpu.memory_space<vmem>>, vector<1x64xf32>
    %11 = vector.shape_cast %10 : vector<1x64xf32> to vector<1x64xf32>
    %12 = vector.broadcast %11 : vector<1x64xf32> to vector<2x64xf32>
    %c0_13 = arith.constant 0 : index
    %c0_14 = arith.constant 0 : index
    %13 = vector.load %arg0[%c0_13, %c0_14] : memref<64x64xf32, #tpu.memory_space<vmem>>, vector<64x64xf32>
    %cst = arith.constant dense<0.000000e+00> : vector<64x96xf32>
    %14 = tpu.matmul %13, %0, %cst {dimension_numbers = #tpu.dot_dimension_numbers<[1], [0], [0], [1], [0, 0, 1, 1], [], []>} : vector<64x64xf32>, vector<64x96xf32>, vector<64x96xf32> -> vector<64x96xf32>
    %15 = vector.broadcast %3 : vector<1x96xf32> to vector<64x96xf32>
    %16 = arith.addf %14, %15 : vector<64x96xf32>
    %cst_15 = arith.constant 0.000000e+00 : f32
    %17 = vector.broadcast %cst_15 : f32 to vector<2x32xf32>
    %cst_16 = arith.constant 0.000000e+00 : f32
    %18 = vector.broadcast %cst_16 : f32 to vector<2x96xf32>
    %19 = vector.extract_strided_slice %16 {offsets = [0, 0], sizes = [2, 96], strides = [1, 1]} : vector<64x96xf32> to vector<2x96xf32>
    %20 = vector.extract_strided_slice %19 {offsets = [0, 0], sizes = [2, 64], strides = [1, 1]} : vector<2x96xf32> to vector<2x64xf32>
    %21 = vector.extract_strided_slice %18 {offsets = [0, 0], sizes = [2, 64], strides = [1, 1]} : vector<2x96xf32> to vector<2x64xf32>
    %22 = arith.addf %20, %21 : vector<2x64xf32>
    %23 = arith.negf %22 : vector<2x64xf32>
    %24 = math.exp %23 : vector<2x64xf32>
    %cst_17 = arith.constant 1.000000e+00 : f32
    %25 = vector.broadcast %cst_17 : f32 to vector<2x64xf32>
    %26 = arith.addf %25, %24 : vector<2x64xf32>
    %27 = arith.divf %25, %26 : vector<2x64xf32>
    %28 = vector.extract_strided_slice %27 {offsets = [0, 0], sizes = [2, 32], strides = [1, 1]} : vector<2x64xf32> to vector<2x32xf32>
    %29 = vector.extract_strided_slice %27 {offsets = [0, 32], sizes = [2, 32], strides = [1, 1]} : vector<2x64xf32> to vector<2x32xf32>
    %30 = vector.extract_strided_slice %19 {offsets = [0, 64], sizes = [2, 32], strides = [1, 1]} : vector<2x96xf32> to vector<2x32xf32>
    %31 = vector.extract_strided_slice %18 {offsets = [0, 64], sizes = [2, 32], strides = [1, 1]} : vector<2x96xf32> to vector<2x32xf32>
    %32 = arith.addf %31, %6 : vector<2x32xf32>
    %33 = arith.mulf %28, %32 : vector<2x32xf32>
    %34 = arith.addf %30, %33 : vector<2x32xf32>
    %35 = math.tanh %34 : vector<2x32xf32>
    %cst_18 = arith.constant 1.000000e+00 : f32
    %36 = vector.broadcast %cst_18 : f32 to vector<2x32xf32>
    %37 = arith.subf %36, %29 : vector<2x32xf32>
    %38 = arith.mulf %37, %35 : vector<2x32xf32>
    %39 = arith.mulf %29, %17 : vector<2x32xf32>
    %40 = arith.addf %38, %39 : vector<2x32xf32>
    %cst_19 = arith.constant dense<0.000000e+00> : vector<2x96xf32>
    %41 = tpu.matmul %40, %1, %cst_19 {dimension_numbers = #tpu.dot_dimension_numbers<[1], [0], [0], [1], [0, 0, 1, 1], [], []>} : vector<2x32xf32>, vector<32x96xf32>, vector<2x96xf32> -> vector<2x96xf32>
    %42 = vector.extract_strided_slice %16 {offsets = [8, 0], sizes = [2, 96], strides = [1, 1]} : vector<64x96xf32> to vector<2x96xf32>
    %43 = vector.extract_strided_slice %42 {offsets = [0, 0], sizes = [2, 64], strides = [1, 1]} : vector<2x96xf32> to vector<2x64xf32>
    %44 = vector.extract_strided_slice %41 {offsets = [0, 0], sizes = [2, 64], strides = [1, 1]} : vector<2x96xf32> to vector<2x64xf32>
    %45 = arith.addf %43, %44 : vector<2x64xf32>
    %46 = arith.negf %45 : vector<2x64xf32>
    %47 = math.exp %46 : vector<2x64xf32>
    %cst_20 = arith.constant 1.000000e+00 : f32
    %48 = vector.broadcast %cst_20 : f32 to vector<2x64xf32>
    %49 = arith.addf %48, %47 : vector<2x64xf32>
    %50 = arith.divf %48, %49 : vector<2x64xf32>
    %51 = vector.extract_strided_slice %50 {offsets = [0, 0], sizes = [2, 32], strides = [1, 1]} : vector<2x64xf32> to vector<2x32xf32>
    %52 = vector.extract_strided_slice %50 {offsets = [0, 32], sizes = [2, 32], strides = [1, 1]} : vector<2x64xf32> to vector<2x32xf32>
    %53 = vector.extract_strided_slice %42 {offsets = [0, 64], sizes = [2, 32], strides = [1, 1]} : vector<2x96xf32> to vector<2x32xf32>
    %54 = vector.extract_strided_slice %41 {offsets = [0, 64], sizes = [2, 32], strides = [1, 1]} : vector<2x96xf32> to vector<2x32xf32>
    %55 = arith.addf %54, %6 : vector<2x32xf32>
    %56 = arith.mulf %51, %55 : vector<2x32xf32>
    %57 = arith.addf %53, %56 : vector<2x32xf32>
    %58 = math.tanh %57 : vector<2x32xf32>
    %cst_21 = arith.constant 1.000000e+00 : f32
    %59 = vector.broadcast %cst_21 : f32 to vector<2x32xf32>
    %60 = arith.subf %59, %52 : vector<2x32xf32>
    %61 = arith.mulf %60, %58 : vector<2x32xf32>
    %62 = arith.mulf %52, %40 : vector<2x32xf32>
    %63 = arith.addf %61, %62 : vector<2x32xf32>
    %cst_22 = arith.constant dense<0.000000e+00> : vector<2x96xf32>
    %64 = tpu.matmul %63, %1, %cst_22 {dimension_numbers = #tpu.dot_dimension_numbers<[1], [0], [0], [1], [0, 0, 1, 1], [], []>} : vector<2x32xf32>, vector<32x96xf32>, vector<2x96xf32> -> vector<2x96xf32>
    %65 = vector.extract_strided_slice %16 {offsets = [16, 0], sizes = [2, 96], strides = [1, 1]} : vector<64x96xf32> to vector<2x96xf32>
    %66 = vector.extract_strided_slice %65 {offsets = [0, 0], sizes = [2, 64], strides = [1, 1]} : vector<2x96xf32> to vector<2x64xf32>
    %67 = vector.extract_strided_slice %64 {offsets = [0, 0], sizes = [2, 64], strides = [1, 1]} : vector<2x96xf32> to vector<2x64xf32>
    %68 = arith.addf %66, %67 : vector<2x64xf32>
    %69 = arith.negf %68 : vector<2x64xf32>
    %70 = math.exp %69 : vector<2x64xf32>
    %cst_23 = arith.constant 1.000000e+00 : f32
    %71 = vector.broadcast %cst_23 : f32 to vector<2x64xf32>
    %72 = arith.addf %71, %70 : vector<2x64xf32>
    %73 = arith.divf %71, %72 : vector<2x64xf32>
    %74 = vector.extract_strided_slice %73 {offsets = [0, 0], sizes = [2, 32], strides = [1, 1]} : vector<2x64xf32> to vector<2x32xf32>
    %75 = vector.extract_strided_slice %73 {offsets = [0, 32], sizes = [2, 32], strides = [1, 1]} : vector<2x64xf32> to vector<2x32xf32>
    %76 = vector.extract_strided_slice %65 {offsets = [0, 64], sizes = [2, 32], strides = [1, 1]} : vector<2x96xf32> to vector<2x32xf32>
    %77 = vector.extract_strided_slice %64 {offsets = [0, 64], sizes = [2, 32], strides = [1, 1]} : vector<2x96xf32> to vector<2x32xf32>
    %78 = arith.addf %77, %6 : vector<2x32xf32>
    %79 = arith.mulf %74, %78 : vector<2x32xf32>
    %80 = arith.addf %76, %79 : vector<2x32xf32>
    %81 = math.tanh %80 : vector<2x32xf32>
    %cst_24 = arith.constant 1.000000e+00 : f32
    %82 = vector.broadcast %cst_24 : f32 to vector<2x32xf32>
    %83 = arith.subf %82, %75 : vector<2x32xf32>
    %84 = arith.mulf %83, %81 : vector<2x32xf32>
    %85 = arith.mulf %75, %63 : vector<2x32xf32>
    %86 = arith.addf %84, %85 : vector<2x32xf32>
    %cst_25 = arith.constant dense<0.000000e+00> : vector<2x96xf32>
    %87 = tpu.matmul %86, %1, %cst_25 {dimension_numbers = #tpu.dot_dimension_numbers<[1], [0], [0], [1], [0, 0, 1, 1], [], []>} : vector<2x32xf32>, vector<32x96xf32>, vector<2x96xf32> -> vector<2x96xf32>
    %88 = vector.extract_strided_slice %16 {offsets = [24, 0], sizes = [2, 96], strides = [1, 1]} : vector<64x96xf32> to vector<2x96xf32>
    %89 = vector.extract_strided_slice %88 {offsets = [0, 0], sizes = [2, 64], strides = [1, 1]} : vector<2x96xf32> to vector<2x64xf32>
    %90 = vector.extract_strided_slice %87 {offsets = [0, 0], sizes = [2, 64], strides = [1, 1]} : vector<2x96xf32> to vector<2x64xf32>
    %91 = arith.addf %89, %90 : vector<2x64xf32>
    %92 = arith.negf %91 : vector<2x64xf32>
    %93 = math.exp %92 : vector<2x64xf32>
    %cst_26 = arith.constant 1.000000e+00 : f32
    %94 = vector.broadcast %cst_26 : f32 to vector<2x64xf32>
    %95 = arith.addf %94, %93 : vector<2x64xf32>
    %96 = arith.divf %94, %95 : vector<2x64xf32>
    %97 = vector.extract_strided_slice %96 {offsets = [0, 0], sizes = [2, 32], strides = [1, 1]} : vector<2x64xf32> to vector<2x32xf32>
    %98 = vector.extract_strided_slice %96 {offsets = [0, 32], sizes = [2, 32], strides = [1, 1]} : vector<2x64xf32> to vector<2x32xf32>
    %99 = vector.extract_strided_slice %88 {offsets = [0, 64], sizes = [2, 32], strides = [1, 1]} : vector<2x96xf32> to vector<2x32xf32>
    %100 = vector.extract_strided_slice %87 {offsets = [0, 64], sizes = [2, 32], strides = [1, 1]} : vector<2x96xf32> to vector<2x32xf32>
    %101 = arith.addf %100, %6 : vector<2x32xf32>
    %102 = arith.mulf %97, %101 : vector<2x32xf32>
    %103 = arith.addf %99, %102 : vector<2x32xf32>
    %104 = math.tanh %103 : vector<2x32xf32>
    %cst_27 = arith.constant 1.000000e+00 : f32
    %105 = vector.broadcast %cst_27 : f32 to vector<2x32xf32>
    %106 = arith.subf %105, %98 : vector<2x32xf32>
    %107 = arith.mulf %106, %104 : vector<2x32xf32>
    %108 = arith.mulf %98, %86 : vector<2x32xf32>
    %109 = arith.addf %107, %108 : vector<2x32xf32>
    %cst_28 = arith.constant dense<0.000000e+00> : vector<2x96xf32>
    %110 = tpu.matmul %109, %1, %cst_28 {dimension_numbers = #tpu.dot_dimension_numbers<[1], [0], [0], [1], [0, 0, 1, 1], [], []>} : vector<2x32xf32>, vector<32x96xf32>, vector<2x96xf32> -> vector<2x96xf32>
    %111 = vector.extract_strided_slice %16 {offsets = [32, 0], sizes = [2, 96], strides = [1, 1]} : vector<64x96xf32> to vector<2x96xf32>
    %112 = vector.extract_strided_slice %111 {offsets = [0, 0], sizes = [2, 64], strides = [1, 1]} : vector<2x96xf32> to vector<2x64xf32>
    %113 = vector.extract_strided_slice %110 {offsets = [0, 0], sizes = [2, 64], strides = [1, 1]} : vector<2x96xf32> to vector<2x64xf32>
    %114 = arith.addf %112, %113 : vector<2x64xf32>
    %115 = arith.negf %114 : vector<2x64xf32>
    %116 = math.exp %115 : vector<2x64xf32>
    %cst_29 = arith.constant 1.000000e+00 : f32
    %117 = vector.broadcast %cst_29 : f32 to vector<2x64xf32>
    %118 = arith.addf %117, %116 : vector<2x64xf32>
    %119 = arith.divf %117, %118 : vector<2x64xf32>
    %120 = vector.extract_strided_slice %119 {offsets = [0, 0], sizes = [2, 32], strides = [1, 1]} : vector<2x64xf32> to vector<2x32xf32>
    %121 = vector.extract_strided_slice %119 {offsets = [0, 32], sizes = [2, 32], strides = [1, 1]} : vector<2x64xf32> to vector<2x32xf32>
    %122 = vector.extract_strided_slice %111 {offsets = [0, 64], sizes = [2, 32], strides = [1, 1]} : vector<2x96xf32> to vector<2x32xf32>
    %123 = vector.extract_strided_slice %110 {offsets = [0, 64], sizes = [2, 32], strides = [1, 1]} : vector<2x96xf32> to vector<2x32xf32>
    %124 = arith.addf %123, %6 : vector<2x32xf32>
    %125 = arith.mulf %120, %124 : vector<2x32xf32>
    %126 = arith.addf %122, %125 : vector<2x32xf32>
    %127 = math.tanh %126 : vector<2x32xf32>
    %cst_30 = arith.constant 1.000000e+00 : f32
    %128 = vector.broadcast %cst_30 : f32 to vector<2x32xf32>
    %129 = arith.subf %128, %121 : vector<2x32xf32>
    %130 = arith.mulf %129, %127 : vector<2x32xf32>
    %131 = arith.mulf %121, %109 : vector<2x32xf32>
    %132 = arith.addf %130, %131 : vector<2x32xf32>
    %cst_31 = arith.constant dense<0.000000e+00> : vector<2x96xf32>
    %133 = tpu.matmul %132, %1, %cst_31 {dimension_numbers = #tpu.dot_dimension_numbers<[1], [0], [0], [1], [0, 0, 1, 1], [], []>} : vector<2x32xf32>, vector<32x96xf32>, vector<2x96xf32> -> vector<2x96xf32>
    %134 = vector.extract_strided_slice %16 {offsets = [40, 0], sizes = [2, 96], strides = [1, 1]} : vector<64x96xf32> to vector<2x96xf32>
    %135 = vector.extract_strided_slice %134 {offsets = [0, 0], sizes = [2, 64], strides = [1, 1]} : vector<2x96xf32> to vector<2x64xf32>
    %136 = vector.extract_strided_slice %133 {offsets = [0, 0], sizes = [2, 64], strides = [1, 1]} : vector<2x96xf32> to vector<2x64xf32>
    %137 = arith.addf %135, %136 : vector<2x64xf32>
    %138 = arith.negf %137 : vector<2x64xf32>
    %139 = math.exp %138 : vector<2x64xf32>
    %cst_32 = arith.constant 1.000000e+00 : f32
    %140 = vector.broadcast %cst_32 : f32 to vector<2x64xf32>
    %141 = arith.addf %140, %139 : vector<2x64xf32>
    %142 = arith.divf %140, %141 : vector<2x64xf32>
    %143 = vector.extract_strided_slice %142 {offsets = [0, 0], sizes = [2, 32], strides = [1, 1]} : vector<2x64xf32> to vector<2x32xf32>
    %144 = vector.extract_strided_slice %142 {offsets = [0, 32], sizes = [2, 32], strides = [1, 1]} : vector<2x64xf32> to vector<2x32xf32>
    %145 = vector.extract_strided_slice %134 {offsets = [0, 64], sizes = [2, 32], strides = [1, 1]} : vector<2x96xf32> to vector<2x32xf32>
    %146 = vector.extract_strided_slice %133 {offsets = [0, 64], sizes = [2, 32], strides = [1, 1]} : vector<2x96xf32> to vector<2x32xf32>
    %147 = arith.addf %146, %6 : vector<2x32xf32>
    %148 = arith.mulf %143, %147 : vector<2x32xf32>
    %149 = arith.addf %145, %148 : vector<2x32xf32>
    %150 = math.tanh %149 : vector<2x32xf32>
    %cst_33 = arith.constant 1.000000e+00 : f32
    %151 = vector.broadcast %cst_33 : f32 to vector<2x32xf32>
    %152 = arith.subf %151, %144 : vector<2x32xf32>
    %153 = arith.mulf %152, %150 : vector<2x32xf32>
    %154 = arith.mulf %144, %132 : vector<2x32xf32>
    %155 = arith.addf %153, %154 : vector<2x32xf32>
    %cst_34 = arith.constant dense<0.000000e+00> : vector<2x96xf32>
    %156 = tpu.matmul %155, %1, %cst_34 {dimension_numbers = #tpu.dot_dimension_numbers<[1], [0], [0], [1], [0, 0, 1, 1], [], []>} : vector<2x32xf32>, vector<32x96xf32>, vector<2x96xf32> -> vector<2x96xf32>
    %157 = vector.extract_strided_slice %16 {offsets = [48, 0], sizes = [2, 96], strides = [1, 1]} : vector<64x96xf32> to vector<2x96xf32>
    %158 = vector.extract_strided_slice %157 {offsets = [0, 0], sizes = [2, 64], strides = [1, 1]} : vector<2x96xf32> to vector<2x64xf32>
    %159 = vector.extract_strided_slice %156 {offsets = [0, 0], sizes = [2, 64], strides = [1, 1]} : vector<2x96xf32> to vector<2x64xf32>
    %160 = arith.addf %158, %159 : vector<2x64xf32>
    %161 = arith.negf %160 : vector<2x64xf32>
    %162 = math.exp %161 : vector<2x64xf32>
    %cst_35 = arith.constant 1.000000e+00 : f32
    %163 = vector.broadcast %cst_35 : f32 to vector<2x64xf32>
    %164 = arith.addf %163, %162 : vector<2x64xf32>
    %165 = arith.divf %163, %164 : vector<2x64xf32>
    %166 = vector.extract_strided_slice %165 {offsets = [0, 0], sizes = [2, 32], strides = [1, 1]} : vector<2x64xf32> to vector<2x32xf32>
    %167 = vector.extract_strided_slice %165 {offsets = [0, 32], sizes = [2, 32], strides = [1, 1]} : vector<2x64xf32> to vector<2x32xf32>
    %168 = vector.extract_strided_slice %157 {offsets = [0, 64], sizes = [2, 32], strides = [1, 1]} : vector<2x96xf32> to vector<2x32xf32>
    %169 = vector.extract_strided_slice %156 {offsets = [0, 64], sizes = [2, 32], strides = [1, 1]} : vector<2x96xf32> to vector<2x32xf32>
    %170 = arith.addf %169, %6 : vector<2x32xf32>
    %171 = arith.mulf %166, %170 : vector<2x32xf32>
    %172 = arith.addf %168, %171 : vector<2x32xf32>
    %173 = math.tanh %172 : vector<2x32xf32>
    %cst_36 = arith.constant 1.000000e+00 : f32
    %174 = vector.broadcast %cst_36 : f32 to vector<2x32xf32>
    %175 = arith.subf %174, %167 : vector<2x32xf32>
    %176 = arith.mulf %175, %173 : vector<2x32xf32>
    %177 = arith.mulf %167, %155 : vector<2x32xf32>
    %178 = arith.addf %176, %177 : vector<2x32xf32>
    %cst_37 = arith.constant dense<0.000000e+00> : vector<2x96xf32>
    %179 = tpu.matmul %178, %1, %cst_37 {dimension_numbers = #tpu.dot_dimension_numbers<[1], [0], [0], [1], [0, 0, 1, 1], [], []>} : vector<2x32xf32>, vector<32x96xf32>, vector<2x96xf32> -> vector<2x96xf32>
    %180 = vector.extract_strided_slice %16 {offsets = [56, 0], sizes = [2, 96], strides = [1, 1]} : vector<64x96xf32> to vector<2x96xf32>
    %181 = vector.extract_strided_slice %13 {offsets = [56, 0], sizes = [2, 64], strides = [1, 1]} : vector<64x64xf32> to vector<2x64xf32>
    %182 = vector.extract_strided_slice %180 {offsets = [0, 0], sizes = [2, 64], strides = [1, 1]} : vector<2x96xf32> to vector<2x64xf32>
    %183 = vector.extract_strided_slice %179 {offsets = [0, 0], sizes = [2, 64], strides = [1, 1]} : vector<2x96xf32> to vector<2x64xf32>
    %184 = arith.addf %182, %183 : vector<2x64xf32>
    %185 = arith.negf %184 : vector<2x64xf32>
    %186 = math.exp %185 : vector<2x64xf32>
    %cst_38 = arith.constant 1.000000e+00 : f32
    %187 = vector.broadcast %cst_38 : f32 to vector<2x64xf32>
    %188 = arith.addf %187, %186 : vector<2x64xf32>
    %189 = arith.divf %187, %188 : vector<2x64xf32>
    %190 = vector.extract_strided_slice %189 {offsets = [0, 0], sizes = [2, 32], strides = [1, 1]} : vector<2x64xf32> to vector<2x32xf32>
    %191 = vector.extract_strided_slice %189 {offsets = [0, 32], sizes = [2, 32], strides = [1, 1]} : vector<2x64xf32> to vector<2x32xf32>
    %192 = vector.extract_strided_slice %180 {offsets = [0, 64], sizes = [2, 32], strides = [1, 1]} : vector<2x96xf32> to vector<2x32xf32>
    %193 = vector.extract_strided_slice %179 {offsets = [0, 64], sizes = [2, 32], strides = [1, 1]} : vector<2x96xf32> to vector<2x32xf32>
    %194 = arith.addf %193, %6 : vector<2x32xf32>
    %195 = arith.mulf %190, %194 : vector<2x32xf32>
    %196 = arith.addf %192, %195 : vector<2x32xf32>
    %197 = math.tanh %196 : vector<2x32xf32>
    %cst_39 = arith.constant 1.000000e+00 : f32
    %198 = vector.broadcast %cst_39 : f32 to vector<2x32xf32>
    %199 = arith.subf %198, %191 : vector<2x32xf32>
    %200 = arith.mulf %199, %197 : vector<2x32xf32>
    %201 = arith.mulf %191, %178 : vector<2x32xf32>
    %202 = arith.addf %200, %201 : vector<2x32xf32>
    %cst_40 = arith.constant dense<0.000000e+00> : vector<2x384xf32>
    %203 = tpu.matmul %202, %2, %cst_40 {dimension_numbers = #tpu.dot_dimension_numbers<[1], [0], [0], [1], [0, 0, 1, 1], [], []>} : vector<2x32xf32>, vector<32x384xf32>, vector<2x384xf32> -> vector<2x384xf32>
    %204 = vector.extract_strided_slice %203 {offsets = [0, 0], sizes = [2, 96], strides = [1, 1]} : vector<2x384xf32> to vector<2x96xf32>
    %205 = vector.extract_strided_slice %203 {offsets = [0, 256], sizes = [2, 64], strides = [1, 1]} : vector<2x384xf32> to vector<2x64xf32>
    %206 = arith.addf %181, %205 : vector<2x64xf32>
    %207 = arith.addf %206, %12 : vector<2x64xf32>
    %208 = vector.extract_strided_slice %203 {offsets = [0, 128], sizes = [2, 96], strides = [1, 1]} : vector<2x384xf32> to vector<2x96xf32>
    %209 = arith.addf %180, %208 : vector<2x96xf32>
    %210 = arith.addf %209, %9 : vector<2x96xf32>
    %211 = vector.extract_strided_slice %210 {offsets = [0, 0], sizes = [2, 64], strides = [1, 1]} : vector<2x96xf32> to vector<2x64xf32>
    %212 = vector.extract_strided_slice %204 {offsets = [0, 0], sizes = [2, 64], strides = [1, 1]} : vector<2x96xf32> to vector<2x64xf32>
    %213 = arith.addf %211, %212 : vector<2x64xf32>
    %214 = arith.negf %213 : vector<2x64xf32>
    %215 = math.exp %214 : vector<2x64xf32>
    %cst_41 = arith.constant 1.000000e+00 : f32
    %216 = vector.broadcast %cst_41 : f32 to vector<2x64xf32>
    %217 = arith.addf %216, %215 : vector<2x64xf32>
    %218 = arith.divf %216, %217 : vector<2x64xf32>
    %219 = vector.extract_strided_slice %218 {offsets = [0, 0], sizes = [2, 32], strides = [1, 1]} : vector<2x64xf32> to vector<2x32xf32>
    %220 = vector.extract_strided_slice %218 {offsets = [0, 32], sizes = [2, 32], strides = [1, 1]} : vector<2x64xf32> to vector<2x32xf32>
    %221 = vector.extract_strided_slice %210 {offsets = [0, 64], sizes = [2, 32], strides = [1, 1]} : vector<2x96xf32> to vector<2x32xf32>
    %222 = vector.extract_strided_slice %204 {offsets = [0, 64], sizes = [2, 32], strides = [1, 1]} : vector<2x96xf32> to vector<2x32xf32>
    %223 = arith.addf %222, %6 : vector<2x32xf32>
    %224 = arith.mulf %219, %223 : vector<2x32xf32>
    %225 = arith.addf %221, %224 : vector<2x32xf32>
    %226 = math.tanh %225 : vector<2x32xf32>
    %cst_42 = arith.constant 1.000000e+00 : f32
    %227 = vector.broadcast %cst_42 : f32 to vector<2x32xf32>
    %228 = arith.subf %227, %220 : vector<2x32xf32>
    %229 = arith.mulf %228, %226 : vector<2x32xf32>
    %230 = arith.mulf %220, %202 : vector<2x32xf32>
    %231 = arith.addf %229, %230 : vector<2x32xf32>
    %cst_43 = arith.constant dense<0.000000e+00> : vector<2x384xf32>
    %232 = tpu.matmul %231, %2, %cst_43 {dimension_numbers = #tpu.dot_dimension_numbers<[1], [0], [0], [1], [0, 0, 1, 1], [], []>} : vector<2x32xf32>, vector<32x384xf32>, vector<2x384xf32> -> vector<2x384xf32>
    %233 = vector.extract_strided_slice %232 {offsets = [0, 0], sizes = [2, 96], strides = [1, 1]} : vector<2x384xf32> to vector<2x96xf32>
    %234 = vector.extract_strided_slice %232 {offsets = [0, 256], sizes = [2, 64], strides = [1, 1]} : vector<2x384xf32> to vector<2x64xf32>
    %235 = arith.addf %207, %234 : vector<2x64xf32>
    %236 = arith.addf %235, %12 : vector<2x64xf32>
    %237 = vector.extract_strided_slice %232 {offsets = [0, 128], sizes = [2, 96], strides = [1, 1]} : vector<2x384xf32> to vector<2x96xf32>
    %238 = arith.addf %210, %237 : vector<2x96xf32>
    %239 = arith.addf %238, %9 : vector<2x96xf32>
    %240 = vector.extract_strided_slice %239 {offsets = [0, 0], sizes = [2, 64], strides = [1, 1]} : vector<2x96xf32> to vector<2x64xf32>
    %241 = vector.extract_strided_slice %233 {offsets = [0, 0], sizes = [2, 64], strides = [1, 1]} : vector<2x96xf32> to vector<2x64xf32>
    %242 = arith.addf %240, %241 : vector<2x64xf32>
    %243 = arith.negf %242 : vector<2x64xf32>
    %244 = math.exp %243 : vector<2x64xf32>
    %cst_44 = arith.constant 1.000000e+00 : f32
    %245 = vector.broadcast %cst_44 : f32 to vector<2x64xf32>
    %246 = arith.addf %245, %244 : vector<2x64xf32>
    %247 = arith.divf %245, %246 : vector<2x64xf32>
    %248 = vector.extract_strided_slice %247 {offsets = [0, 0], sizes = [2, 32], strides = [1, 1]} : vector<2x64xf32> to vector<2x32xf32>
    %249 = vector.extract_strided_slice %247 {offsets = [0, 32], sizes = [2, 32], strides = [1, 1]} : vector<2x64xf32> to vector<2x32xf32>
    %250 = vector.extract_strided_slice %239 {offsets = [0, 64], sizes = [2, 32], strides = [1, 1]} : vector<2x96xf32> to vector<2x32xf32>
    %251 = vector.extract_strided_slice %233 {offsets = [0, 64], sizes = [2, 32], strides = [1, 1]} : vector<2x96xf32> to vector<2x32xf32>
    %252 = arith.addf %251, %6 : vector<2x32xf32>
    %253 = arith.mulf %248, %252 : vector<2x32xf32>
    %254 = arith.addf %250, %253 : vector<2x32xf32>
    %255 = math.tanh %254 : vector<2x32xf32>
    %cst_45 = arith.constant 1.000000e+00 : f32
    %256 = vector.broadcast %cst_45 : f32 to vector<2x32xf32>
    %257 = arith.subf %256, %249 : vector<2x32xf32>
    %258 = arith.mulf %257, %255 : vector<2x32xf32>
    %259 = arith.mulf %249, %231 : vector<2x32xf32>
    %260 = arith.addf %258, %259 : vector<2x32xf32>
    %cst_46 = arith.constant dense<0.000000e+00> : vector<2x384xf32>
    %261 = tpu.matmul %260, %2, %cst_46 {dimension_numbers = #tpu.dot_dimension_numbers<[1], [0], [0], [1], [0, 0, 1, 1], [], []>} : vector<2x32xf32>, vector<32x384xf32>, vector<2x384xf32> -> vector<2x384xf32>
    %262 = vector.extract_strided_slice %261 {offsets = [0, 0], sizes = [2, 96], strides = [1, 1]} : vector<2x384xf32> to vector<2x96xf32>
    %263 = vector.extract_strided_slice %261 {offsets = [0, 256], sizes = [2, 64], strides = [1, 1]} : vector<2x384xf32> to vector<2x64xf32>
    %264 = arith.addf %236, %263 : vector<2x64xf32>
    %265 = arith.addf %264, %12 : vector<2x64xf32>
    %266 = vector.extract_strided_slice %261 {offsets = [0, 128], sizes = [2, 96], strides = [1, 1]} : vector<2x384xf32> to vector<2x96xf32>
    %267 = arith.addf %239, %266 : vector<2x96xf32>
    %268 = arith.addf %267, %9 : vector<2x96xf32>
    %269 = vector.extract_strided_slice %268 {offsets = [0, 0], sizes = [2, 64], strides = [1, 1]} : vector<2x96xf32> to vector<2x64xf32>
    %270 = vector.extract_strided_slice %262 {offsets = [0, 0], sizes = [2, 64], strides = [1, 1]} : vector<2x96xf32> to vector<2x64xf32>
    %271 = arith.addf %269, %270 : vector<2x64xf32>
    %272 = arith.negf %271 : vector<2x64xf32>
    %273 = math.exp %272 : vector<2x64xf32>
    %cst_47 = arith.constant 1.000000e+00 : f32
    %274 = vector.broadcast %cst_47 : f32 to vector<2x64xf32>
    %275 = arith.addf %274, %273 : vector<2x64xf32>
    %276 = arith.divf %274, %275 : vector<2x64xf32>
    %277 = vector.extract_strided_slice %276 {offsets = [0, 0], sizes = [2, 32], strides = [1, 1]} : vector<2x64xf32> to vector<2x32xf32>
    %278 = vector.extract_strided_slice %276 {offsets = [0, 32], sizes = [2, 32], strides = [1, 1]} : vector<2x64xf32> to vector<2x32xf32>
    %279 = vector.extract_strided_slice %268 {offsets = [0, 64], sizes = [2, 32], strides = [1, 1]} : vector<2x96xf32> to vector<2x32xf32>
    %280 = vector.extract_strided_slice %262 {offsets = [0, 64], sizes = [2, 32], strides = [1, 1]} : vector<2x96xf32> to vector<2x32xf32>
    %281 = arith.addf %280, %6 : vector<2x32xf32>
    %282 = arith.mulf %277, %281 : vector<2x32xf32>
    %283 = arith.addf %279, %282 : vector<2x32xf32>
    %284 = math.tanh %283 : vector<2x32xf32>
    %cst_48 = arith.constant 1.000000e+00 : f32
    %285 = vector.broadcast %cst_48 : f32 to vector<2x32xf32>
    %286 = arith.subf %285, %278 : vector<2x32xf32>
    %287 = arith.mulf %286, %284 : vector<2x32xf32>
    %288 = arith.mulf %278, %260 : vector<2x32xf32>
    %289 = arith.addf %287, %288 : vector<2x32xf32>
    %cst_49 = arith.constant dense<0.000000e+00> : vector<2x384xf32>
    %290 = tpu.matmul %289, %2, %cst_49 {dimension_numbers = #tpu.dot_dimension_numbers<[1], [0], [0], [1], [0, 0, 1, 1], [], []>} : vector<2x32xf32>, vector<32x384xf32>, vector<2x384xf32> -> vector<2x384xf32>
    %291 = vector.extract_strided_slice %290 {offsets = [0, 0], sizes = [2, 96], strides = [1, 1]} : vector<2x384xf32> to vector<2x96xf32>
    %292 = vector.extract_strided_slice %290 {offsets = [0, 256], sizes = [2, 64], strides = [1, 1]} : vector<2x384xf32> to vector<2x64xf32>
    %293 = arith.addf %265, %292 : vector<2x64xf32>
    %294 = arith.addf %293, %12 : vector<2x64xf32>
    %295 = vector.extract_strided_slice %290 {offsets = [0, 128], sizes = [2, 96], strides = [1, 1]} : vector<2x384xf32> to vector<2x96xf32>
    %296 = arith.addf %268, %295 : vector<2x96xf32>
    %297 = arith.addf %296, %9 : vector<2x96xf32>
    %298 = vector.extract_strided_slice %297 {offsets = [0, 0], sizes = [2, 64], strides = [1, 1]} : vector<2x96xf32> to vector<2x64xf32>
    %299 = vector.extract_strided_slice %291 {offsets = [0, 0], sizes = [2, 64], strides = [1, 1]} : vector<2x96xf32> to vector<2x64xf32>
    %300 = arith.addf %298, %299 : vector<2x64xf32>
    %301 = arith.negf %300 : vector<2x64xf32>
    %302 = math.exp %301 : vector<2x64xf32>
    %cst_50 = arith.constant 1.000000e+00 : f32
    %303 = vector.broadcast %cst_50 : f32 to vector<2x64xf32>
    %304 = arith.addf %303, %302 : vector<2x64xf32>
    %305 = arith.divf %303, %304 : vector<2x64xf32>
    %306 = vector.extract_strided_slice %305 {offsets = [0, 0], sizes = [2, 32], strides = [1, 1]} : vector<2x64xf32> to vector<2x32xf32>
    %307 = vector.extract_strided_slice %305 {offsets = [0, 32], sizes = [2, 32], strides = [1, 1]} : vector<2x64xf32> to vector<2x32xf32>
    %308 = vector.extract_strided_slice %297 {offsets = [0, 64], sizes = [2, 32], strides = [1, 1]} : vector<2x96xf32> to vector<2x32xf32>
    %309 = vector.extract_strided_slice %291 {offsets = [0, 64], sizes = [2, 32], strides = [1, 1]} : vector<2x96xf32> to vector<2x32xf32>
    %310 = arith.addf %309, %6 : vector<2x32xf32>
    %311 = arith.mulf %306, %310 : vector<2x32xf32>
    %312 = arith.addf %308, %311 : vector<2x32xf32>
    %313 = math.tanh %312 : vector<2x32xf32>
    %cst_51 = arith.constant 1.000000e+00 : f32
    %314 = vector.broadcast %cst_51 : f32 to vector<2x32xf32>
    %315 = arith.subf %314, %307 : vector<2x32xf32>
    %316 = arith.mulf %315, %313 : vector<2x32xf32>
    %317 = arith.mulf %307, %289 : vector<2x32xf32>
    %318 = arith.addf %316, %317 : vector<2x32xf32>
    %cst_52 = arith.constant dense<0.000000e+00> : vector<2x384xf32>
    %319 = tpu.matmul %318, %2, %cst_52 {dimension_numbers = #tpu.dot_dimension_numbers<[1], [0], [0], [1], [0, 0, 1, 1], [], []>} : vector<2x32xf32>, vector<32x384xf32>, vector<2x384xf32> -> vector<2x384xf32>
    %320 = vector.extract_strided_slice %319 {offsets = [0, 0], sizes = [2, 96], strides = [1, 1]} : vector<2x384xf32> to vector<2x96xf32>
    %321 = vector.extract_strided_slice %319 {offsets = [0, 256], sizes = [2, 64], strides = [1, 1]} : vector<2x384xf32> to vector<2x64xf32>
    %322 = arith.addf %294, %321 : vector<2x64xf32>
    %323 = arith.addf %322, %12 : vector<2x64xf32>
    %324 = vector.extract_strided_slice %319 {offsets = [0, 128], sizes = [2, 96], strides = [1, 1]} : vector<2x384xf32> to vector<2x96xf32>
    %325 = arith.addf %297, %324 : vector<2x96xf32>
    %326 = arith.addf %325, %9 : vector<2x96xf32>
    %327 = vector.extract_strided_slice %326 {offsets = [0, 0], sizes = [2, 64], strides = [1, 1]} : vector<2x96xf32> to vector<2x64xf32>
    %328 = vector.extract_strided_slice %320 {offsets = [0, 0], sizes = [2, 64], strides = [1, 1]} : vector<2x96xf32> to vector<2x64xf32>
    %329 = arith.addf %327, %328 : vector<2x64xf32>
    %330 = arith.negf %329 : vector<2x64xf32>
    %331 = math.exp %330 : vector<2x64xf32>
    %cst_53 = arith.constant 1.000000e+00 : f32
    %332 = vector.broadcast %cst_53 : f32 to vector<2x64xf32>
    %333 = arith.addf %332, %331 : vector<2x64xf32>
    %334 = arith.divf %332, %333 : vector<2x64xf32>
    %335 = vector.extract_strided_slice %334 {offsets = [0, 0], sizes = [2, 32], strides = [1, 1]} : vector<2x64xf32> to vector<2x32xf32>
    %336 = vector.extract_strided_slice %334 {offsets = [0, 32], sizes = [2, 32], strides = [1, 1]} : vector<2x64xf32> to vector<2x32xf32>
    %337 = vector.extract_strided_slice %326 {offsets = [0, 64], sizes = [2, 32], strides = [1, 1]} : vector<2x96xf32> to vector<2x32xf32>
    %338 = vector.extract_strided_slice %320 {offsets = [0, 64], sizes = [2, 32], strides = [1, 1]} : vector<2x96xf32> to vector<2x32xf32>
    %339 = arith.addf %338, %6 : vector<2x32xf32>
    %340 = arith.mulf %335, %339 : vector<2x32xf32>
    %341 = arith.addf %337, %340 : vector<2x32xf32>
    %342 = math.tanh %341 : vector<2x32xf32>
    %cst_54 = arith.constant 1.000000e+00 : f32
    %343 = vector.broadcast %cst_54 : f32 to vector<2x32xf32>
    %344 = arith.subf %343, %336 : vector<2x32xf32>
    %345 = arith.mulf %344, %342 : vector<2x32xf32>
    %346 = arith.mulf %336, %318 : vector<2x32xf32>
    %347 = arith.addf %345, %346 : vector<2x32xf32>
    %cst_55 = arith.constant dense<0.000000e+00> : vector<2x384xf32>
    %348 = tpu.matmul %347, %2, %cst_55 {dimension_numbers = #tpu.dot_dimension_numbers<[1], [0], [0], [1], [0, 0, 1, 1], [], []>} : vector<2x32xf32>, vector<32x384xf32>, vector<2x384xf32> -> vector<2x384xf32>
    %349 = vector.extract_strided_slice %348 {offsets = [0, 0], sizes = [2, 96], strides = [1, 1]} : vector<2x384xf32> to vector<2x96xf32>
    %350 = vector.extract_strided_slice %348 {offsets = [0, 256], sizes = [2, 64], strides = [1, 1]} : vector<2x384xf32> to vector<2x64xf32>
    %351 = arith.addf %323, %350 : vector<2x64xf32>
    %352 = arith.addf %351, %12 : vector<2x64xf32>
    %353 = vector.extract_strided_slice %348 {offsets = [0, 128], sizes = [2, 96], strides = [1, 1]} : vector<2x384xf32> to vector<2x96xf32>
    %354 = arith.addf %326, %353 : vector<2x96xf32>
    %355 = arith.addf %354, %9 : vector<2x96xf32>
    %356 = vector.extract_strided_slice %355 {offsets = [0, 0], sizes = [2, 64], strides = [1, 1]} : vector<2x96xf32> to vector<2x64xf32>
    %357 = vector.extract_strided_slice %349 {offsets = [0, 0], sizes = [2, 64], strides = [1, 1]} : vector<2x96xf32> to vector<2x64xf32>
    %358 = arith.addf %356, %357 : vector<2x64xf32>
    %359 = arith.negf %358 : vector<2x64xf32>
    %360 = math.exp %359 : vector<2x64xf32>
    %cst_56 = arith.constant 1.000000e+00 : f32
    %361 = vector.broadcast %cst_56 : f32 to vector<2x64xf32>
    %362 = arith.addf %361, %360 : vector<2x64xf32>
    %363 = arith.divf %361, %362 : vector<2x64xf32>
    %364 = vector.extract_strided_slice %363 {offsets = [0, 0], sizes = [2, 32], strides = [1, 1]} : vector<2x64xf32> to vector<2x32xf32>
    %365 = vector.extract_strided_slice %363 {offsets = [0, 32], sizes = [2, 32], strides = [1, 1]} : vector<2x64xf32> to vector<2x32xf32>
    %366 = vector.extract_strided_slice %355 {offsets = [0, 64], sizes = [2, 32], strides = [1, 1]} : vector<2x96xf32> to vector<2x32xf32>
    %367 = vector.extract_strided_slice %349 {offsets = [0, 64], sizes = [2, 32], strides = [1, 1]} : vector<2x96xf32> to vector<2x32xf32>
    %368 = arith.addf %367, %6 : vector<2x32xf32>
    %369 = arith.mulf %364, %368 : vector<2x32xf32>
    %370 = arith.addf %366, %369 : vector<2x32xf32>
    %371 = math.tanh %370 : vector<2x32xf32>
    %cst_57 = arith.constant 1.000000e+00 : f32
    %372 = vector.broadcast %cst_57 : f32 to vector<2x32xf32>
    %373 = arith.subf %372, %365 : vector<2x32xf32>
    %374 = arith.mulf %373, %371 : vector<2x32xf32>
    %375 = arith.mulf %365, %347 : vector<2x32xf32>
    %376 = arith.addf %374, %375 : vector<2x32xf32>
    %cst_58 = arith.constant dense<0.000000e+00> : vector<2x384xf32>
    %377 = tpu.matmul %376, %2, %cst_58 {dimension_numbers = #tpu.dot_dimension_numbers<[1], [0], [0], [1], [0, 0, 1, 1], [], []>} : vector<2x32xf32>, vector<32x384xf32>, vector<2x384xf32> -> vector<2x384xf32>
    %378 = vector.extract_strided_slice %377 {offsets = [0, 0], sizes = [2, 96], strides = [1, 1]} : vector<2x384xf32> to vector<2x96xf32>
    %379 = vector.extract_strided_slice %377 {offsets = [0, 256], sizes = [2, 64], strides = [1, 1]} : vector<2x384xf32> to vector<2x64xf32>
    %380 = arith.addf %352, %379 : vector<2x64xf32>
    %381 = arith.addf %380, %12 : vector<2x64xf32>
    %382 = vector.extract_strided_slice %377 {offsets = [0, 128], sizes = [2, 96], strides = [1, 1]} : vector<2x384xf32> to vector<2x96xf32>
    %383 = arith.addf %355, %382 : vector<2x96xf32>
    %384 = arith.addf %383, %9 : vector<2x96xf32>
    %385 = vector.extract_strided_slice %384 {offsets = [0, 0], sizes = [2, 64], strides = [1, 1]} : vector<2x96xf32> to vector<2x64xf32>
    %386 = vector.extract_strided_slice %378 {offsets = [0, 0], sizes = [2, 64], strides = [1, 1]} : vector<2x96xf32> to vector<2x64xf32>
    %387 = arith.addf %385, %386 : vector<2x64xf32>
    %388 = arith.negf %387 : vector<2x64xf32>
    %389 = math.exp %388 : vector<2x64xf32>
    %cst_59 = arith.constant 1.000000e+00 : f32
    %390 = vector.broadcast %cst_59 : f32 to vector<2x64xf32>
    %391 = arith.addf %390, %389 : vector<2x64xf32>
    %392 = arith.divf %390, %391 : vector<2x64xf32>
    %393 = vector.extract_strided_slice %392 {offsets = [0, 0], sizes = [2, 32], strides = [1, 1]} : vector<2x64xf32> to vector<2x32xf32>
    %394 = vector.extract_strided_slice %392 {offsets = [0, 32], sizes = [2, 32], strides = [1, 1]} : vector<2x64xf32> to vector<2x32xf32>
    %395 = vector.extract_strided_slice %384 {offsets = [0, 64], sizes = [2, 32], strides = [1, 1]} : vector<2x96xf32> to vector<2x32xf32>
    %396 = vector.extract_strided_slice %378 {offsets = [0, 64], sizes = [2, 32], strides = [1, 1]} : vector<2x96xf32> to vector<2x32xf32>
    %397 = arith.addf %396, %6 : vector<2x32xf32>
    %398 = arith.mulf %393, %397 : vector<2x32xf32>
    %399 = arith.addf %395, %398 : vector<2x32xf32>
    %400 = math.tanh %399 : vector<2x32xf32>
    %cst_60 = arith.constant 1.000000e+00 : f32
    %401 = vector.broadcast %cst_60 : f32 to vector<2x32xf32>
    %402 = arith.subf %401, %394 : vector<2x32xf32>
    %403 = arith.mulf %402, %400 : vector<2x32xf32>
    %404 = arith.mulf %394, %376 : vector<2x32xf32>
    %405 = arith.addf %403, %404 : vector<2x32xf32>
    %cst_61 = arith.constant dense<0.000000e+00> : vector<2x384xf32>
    %406 = tpu.matmul %405, %2, %cst_61 {dimension_numbers = #tpu.dot_dimension_numbers<[1], [0], [0], [1], [0, 0, 1, 1], [], []>} : vector<2x32xf32>, vector<32x384xf32>, vector<2x384xf32> -> vector<2x384xf32>
    %407 = vector.extract_strided_slice %406 {offsets = [0, 256], sizes = [2, 64], strides = [1, 1]} : vector<2x384xf32> to vector<2x64xf32>
    %408 = arith.addf %381, %407 : vector<2x64xf32>
    %409 = arith.addf %408, %12 : vector<2x64xf32>
    %410 = tpu.concatenate %207, %236, %265, %294, %323, %352, %381, %409 in 0 : vector<2x64xf32>, vector<2x64xf32>, vector<2x64xf32>, vector<2x64xf32>, vector<2x64xf32>, vector<2x64xf32>, vector<2x64xf32>, vector<2x64xf32> -> vector<16x64xf32>
    %c0_62 = arith.constant 0 : index
    %c0_63 = arith.constant 0 : index
    %411 = vector.load %arg8[%c0_62, %c0_63] : memref<16x64xf32, #tpu.memory_space<vmem>>, vector<16x64xf32>
    tpu.vector_store %arg8[%c0_62, %c0_63], %410 {strides = array<i32>} : memref<16x64xf32, #tpu.memory_space<vmem>>, vector<16x64xf32>,
    return
  }
}

</mosaic_0001>

<llo_original>
// kernel: motion_predictor_forward.1
$region0: #{motion_predictor_forward.1}
  #allocation0 [shape = 'u32[]', space=smem, size = 0x4, offset = 0x4, fixed_abs, tag = 'smem constant byte address 0x4 - core index']
  #allocation1 [shape = 'u32[144,128]{1,0:T(1,128)}', space=vmem, size = 0x12000, scoped, tag = 'internal scratch']
  %s0 = inlined_call_operand.vmem [shape: f32[64,64], index: 0, kind: input, shape index: {}]
  %s1 = inlined_call_operand.hbm [shape: f32[64,96], index: 1, kind: input, shape index: {}]
  %s2 = inlined_call_operand.hbm [shape: f32[32,96], index: 2, kind: input, shape index: {}]
  %s3 = inlined_call_operand.vmem [shape: f32[32,384], index: 3, kind: input, shape index: {}]
  %s4 = inlined_call_operand.vmem [shape: f32[1,96], index: 4, kind: input, shape index: {}]
  %s5 = inlined_call_operand.vmem [shape: f32[1,32], index: 5, kind: input, shape index: {}]
  %s6 = inlined_call_operand.vmem [shape: f32[1,96], index: 6, kind: input, shape index: {}]
  %s7 = inlined_call_operand.vmem [shape: f32[1,64], index: 7, kind: input, shape index: {}]
  %s8 = inlined_call_operand.vmem [shape: f32[16,64], index: 8, kind: output, shape index: {}]
  %s9 = sld [smem:[#allocation0]]
  $region50: #{motion_predictor_forward.1} parent=0
    _
  %s11 = ssub.s32 1, %s9
  %s12 = scalar_select 0, %s11, %s9
  $region1: #{motion_predictor_forward.1} parent=0
    #allocation2 [shape = 'u8[32768]{0}', space=vmem, size = 0x8000, scoped, tag = 'input window, operand 1, single buffered']
    #allocation3 [shape = 's32[1]{0}', space=sflag, size = 0x4, scoped, tag = 'scoped memory for motion_predictor_forward.1']
    #allocation4 [shape = 'u8[16384]{0}', space=vmem, size = 0x4000, scoped, tag = 'input window, operand 2, single buffered']
    #allocation5 [shape = 's32[1]{0}', space=sflag, size = 0x4, scoped, tag = 'scoped memory for motion_predictor_forward.1']
    %13 = vsyncpa [#allocation3], 0
    %14 = vsyncpa [#allocation5], 0
    // Predicated region
    $region2: #{motion_predictor_forward.1} parent=1 // pred_check
      _
    $region3: #{motion_predictor_forward.1} parent=1 // pred_check_branch
      %16 = sbr.rel (0) target = $region5
    $region4: #{motion_predictor_forward.1} parent=1 // pred_region
      _
    $region5: #{motion_predictor_forward.1} parent=1 // pred_fallthru
      _
    // Predicated region
    $region6: #{motion_predictor_forward.1} parent=1 // pred_check
      _
    $region7: #{motion_predictor_forward.1} parent=1 // pred_check_branch
      %18 = sbr.rel (0) target = $region9
    $region8: #{motion_predictor_forward.1} parent=1 // pred_region
      %s20 = ssub.s32 1024, 1024
      %21 = vsyncadd [#allocation3], %s20
      %s22 = sshll.u32 [#allocation2], 4
      %s23 = int_to_ptr.vmem [resolvable:$true] %s22
      %28 = dma.hbm_to_vmem [thread:$0]  %s1, 1024, %s23, [#allocation3], 128, 128, 8
    $region9: #{motion_predictor_forward.1} parent=1 // pred_fallthru
      _
    // Predicated region
    $region10: #{motion_predictor_forward.1} parent=1 // pred_check
      _
    $region11: #{motion_predictor_forward.1} parent=1 // pred_check_branch
      %30 = sbr.rel (0) target = $region13
    $region12: #{motion_predictor_forward.1} parent=1 // pred_region
      %s32 = ssub.s32 512, 512
      %33 = vsyncadd [#allocation5], %s32
      %s34 = sshll.u32 [#allocation4], 4
      %s35 = int_to_ptr.vmem [resolvable:$true] %s34
      %40 = dma.hbm_to_vmem [thread:$0]  %s2, 512, %s35, [#allocation5], 128, 128, 8
    $region13: #{motion_predictor_forward.1} parent=1 // pred_fallthru
      _
    // Predicated region
    $region14: #{motion_predictor_forward.1} parent=1 // pred_check
      _
    $region15: #{motion_predictor_forward.1} parent=1 // pred_check_branch
      %42 = sbr.rel (0) target = $region17
    $region16: #{motion_predictor_forward.1} parent=1 // pred_region
      _
    $region17: #{motion_predictor_forward.1} parent=1 // pred_fallthru
      _
    // Predicated region
    $region18: #{motion_predictor_forward.1} parent=1 // pred_check
      _
    $region19: #{motion_predictor_forward.1} parent=1 // pred_check_branch
      %44 = sbr.rel (0) target = $region21
    $region20: #{motion_predictor_forward.1} parent=1 // pred_region
      _
    $region21: #{motion_predictor_forward.1} parent=1 // pred_fallthru
      _
    // Predicated region
    $region22: #{motion_predictor_forward.1} parent=1 // pred_check
      _
    $region23: #{motion_predictor_forward.1} parent=1 // pred_check_branch
      %46 = sbr.rel (0) target = $region25
    $region24: #{motion_predictor_forward.1} parent=1 // pred_region
      _
    $region25: #{motion_predictor_forward.1} parent=1 // pred_fallthru
      _
    // Predicated region
    $region26: #{motion_predictor_forward.1} parent=1 // pred_check
      _
    $region27: #{motion_predictor_forward.1} parent=1 // pred_check_branch
      %48 = sbr.rel (0) target = $region29
    $region28: #{motion_predictor_forward.1} parent=1 // pred_region
      _
    $region29: #{motion_predictor_forward.1} parent=1 // pred_fallthru
      _
    // Predicated region
    $region30: #{motion_predictor_forward.1} parent=1 // pred_check
      _
    $region31: #{motion_predictor_forward.1} parent=1 // pred_check_branch
      %50 = sbr.rel (0) target = $region33
    $region32: #{motion_predictor_forward.1} parent=1 // pred_region
      _
    $region33: #{motion_predictor_forward.1} parent=1 // pred_fallthru
      _
    // Predicated region
    $region34: #{motion_predictor_forward.1} parent=1 // pred_check
      _
    $region35: #{motion_predictor_forward.1} parent=1 // pred_check_branch
      %52 = sbr.rel (0) target = $region37
    $region36: #{motion_predictor_forward.1} parent=1 // pred_region
      %53 = dma.done [#allocation3], 1024
    $region37: #{motion_predictor_forward.1} parent=1 // pred_fallthru
      _
    // Predicated region
    $region38: #{motion_predictor_forward.1} parent=1 // pred_check
      _
    $region39: #{motion_predictor_forward.1} parent=1 // pred_check_branch
      %55 = sbr.rel (0) target = $region41
    $region40: #{motion_predictor_forward.1} parent=1 // pred_region
      %56 = dma.done [#allocation5], 512
    $region41: #{motion_predictor_forward.1} parent=1 // pred_fallthru
      _
    %v57 = vld [vmem:[#allocation2] sm:$0xff]
    %v58 = vld [vmem:[#allocation2 + $0x8] sm:$0xff]
    %v59 = vld [vmem:[#allocation2 + $0x10] sm:$0xff]
    %v60 = vld [vmem:[#allocation2 + $0x18] sm:$0xff]
    %v61 = vld [vmem:[#allocation2 + $0x20] sm:$0xff]
    %v62 = vld [vmem:[#allocation2 + $0x28] sm:$0xff]
    %v63 = vld [vmem:[#allocation2 + $0x30] sm:$0xff]
    %v64 = vld [vmem:[#allocation2 + $0x38] sm:$0xff]
    %v65 = vld [vmem:[#allocation4] sm:$0xff]
    %v66 = vld [vmem:[#allocation4 + $0x8] sm:$0xff]
    %v67 = vld [vmem:[#allocation4 + $0x10] sm:$0xff]
    %v68 = vld [vmem:[#allocation4 + $0x18] sm:$0xff]
    %v69 = vld [vmem:[%s3] sm:$0xff]
    %v70 = vld [vmem:[%s3 + $0x8] sm:$0xff]
    %v71 = vld [vmem:[%s3 + $0x10] sm:$0xff]
    %v72 = vld [vmem:[%s3 + $0x18] sm:$0xff]
    %v73 = vld [vmem:[%s3 + $0x20] sm:$0xff]
    %v74 = vld [vmem:[%s3 + $0x28] sm:$0xff]
    %v75 = vld [vmem:[%s3 + $0x30] sm:$0xff]
    %v76 = vld [vmem:[%s3 + $0x38] sm:$0xff]
    %v77 = vld [vmem:[%s3 + $0x40] sm:$0xff]
    %v78 = vld [vmem:[%s3 + $0x48] sm:$0xff]
    %v79 = vld [vmem:[%s3 + $0x50] sm:$0xff]
    %v80 = vld [vmem:[%s3 + $0x58] sm:$0xff]
    %v81 = vld [vmem:[%s4] sm:$0x1]
    %v82 = vld [vmem:[%s5] sm:$0x1]
    %v84 = vlaneseq
    %v85 = vshrl.u32 %v84, 7
    %v86 = vsub.s32 0, %v85
    %v87 = vrot.slane %v82, %v86
    %v89 = vld [vmem:[%s6] sm:$0x1]
    %v91 = vlaneseq
    %v92 = vshrl.u32 %v91, 7
    %v93 = vsub.s32 0, %v92
    %v94 = vrot.slane %v89, %v93
    %v96 = vld [vmem:[%s7] sm:$0x1]
    %v98 = vlaneseq
    %v99 = vshrl.u32 %v98, 7
    %v100 = vsub.s32 0, %v99
    %v101 = vrot.slane %v96, %v100
    %v103 = vld [vmem:[%s0] sm:$0xff]
    %v104 = vld [vmem:[%s0 + $0x8] sm:$0xff]
    %v105 = vld [vmem:[%s0 + $0x10] sm:$0xff]
    %v106 = vld [vmem:[%s0 + $0x18] sm:$0xff]
    %v107 = vld [vmem:[%s0 + $0x20] sm:$0xff]
    %v108 = vld [vmem:[%s0 + $0x28] sm:$0xff]
    %v109 = vld [vmem:[%s0 + $0x30] sm:$0xff]
    %v110 = vld [vmem:[%s0 + $0x38] sm:$0xff]
    %v112 = vlaneseq
    %v113 = vshrl.u32 %v112, 7
    %v114 = vsub.s32 0, %v113
    %v115 = vrot.slane %v81, %v114
    %vm117 = vcmask 523264
    %v119 = vsel %vm117, %v103, 0
    %v122 = vsel %vm117, %v104, 0
    %v125 = vsel %vm117, %v105, 0
    %v128 = vsel %vm117, %v106, 0
    %v131 = vsel %vm117, %v107, 0
    %v134 = vsel %vm117, %v108, 0
    %v137 = vsel %vm117, %v109, 0
    %v140 = vsel %vm117, %v110, 0
    %142 = vmatprep.subr.mxu0 0.0
    %143 = vmatpush1.msra.mxu0 %v57
    %144 = vmatprep.subr.mxu0 0.0
    %145 = vmatpush1.msra.mxu0 %v58
    %146 = vmatprep.subr.mxu0 0.0
    %147 = vmatpush1.msra.mxu0 %v59
    %148 = vmatprep.subr.mxu0 0.0
    %149 = vmatpush1.msra.mxu0 %v60
    %150 = vmatprep.subr.mxu0 0.0
    %151 = vmatpush1.msra.mxu0 %v61
    %152 = vmatprep.subr.mxu0 0.0
    %153 = vmatpush1.msra.mxu0 %v62
    %154 = vmatprep.subr.mxu0 0.0
    %155 = vmatpush1.msra.mxu0 %v63
    %156 = vmatprep.subr.mxu0 0.0
    %157 = vmatpush1.msra.mxu0 %v64
    %158 = vmatprep.subr.mxu0 0.0
    %159 = vmatpush1.msra.mxu0 0.0
    %160 = vmatprep.subr.mxu0 0.0
    %161 = vmatpush1.msra.mxu0 0.0
    %162 = vmatprep.subr.mxu0 0.0
    %163 = vmatpush1.msra.mxu0 0.0
    %164 = vmatprep.subr.mxu0 0.0
    %165 = vmatpush1.msra.mxu0 0.0
    %166 = vmatprep.subr.mxu0 0.0
    %167 = vmatpush1.msra.mxu0 0.0
    %168 = vmatprep.subr.mxu0 0.0
    %169 = vmatpush1.msra.mxu0 0.0
    %170 = vmatprep.subr.mxu0 0.0
    %171 = vmatpush1.msra.mxu0 0.0
    %172 = vmatprep.subr.mxu0 0.0
    %173 = vmatpush1.msra.mxu0 0.0
    %174 = vmatprep.subr.mxu0 0.0
    %175 = vmatpush1.msra.mxu0 0.0
    %176 = vmatprep.subr.mxu0 0.0
    %177 = vmatpush1.msra.mxu0 0.0
    %178 = vmatprep.subr.mxu0 0.0
    %179 = vmatpush1.msra.mxu0 0.0
    %180 = vmatprep.subr.mxu0 0.0
    %181 = vmatpush1.msra.mxu0 0.0
    %182 = vmatprep.subr.mxu0 0.0
    %183 = vmatpush1.msra.mxu0 0.0
    %184 = vmatprep.subr.mxu0 0.0
    %185 = vmatpush1.msra.mxu0 0.0
    %186 = vmatprep.subr.mxu0 0.0
    %187 = vmatpush1.msra.mxu0 0.0
    %188 = vmatprep.subr.mxu0 0.0
    %189 = vmatpush1.msra.mxu0 0.0
    %190 = vmatprep.subr.mxu0 0.0
    %191 = vmatpush1.msra.mxu0 0.0
    %192 = vmatprep.subr.mxu0 0.0
    %193 = vmatpush1.msra.mxu0 0.0
    %194 = vmatprep.subr.mxu0 0.0
    %195 = vmatpush1.msra.mxu0 0.0
    %196 = vmatprep.subr.mxu0 0.0
    %197 = vmatpush1.msra.mxu0 0.0
    %198 = vmatprep.subr.mxu0 0.0
    %199 = vmatpush1.msra.mxu0 0.0
    %200 = vmatprep.subr.mxu0 0.0
    %201 = vmatpush1.msra.mxu0 0.0
    %202 = vmatprep.subr.mxu0 0.0
    %203 = vmatpush1.msra.mxu0 0.0
    %204 = vmatprep.subr.mxu0 0.0
    %205 = vmatpush1.msra.mxu0 0.0
    %206 = vmatprep.mubr.f32.mxu0 0.0
    %207 = vmatmul.mubr.f32.gmra.mrb[0].mxu0 %v119
    %v208 = vpop.f32.mrb[0].mxu0
    %v209 = vadd.f32 %v115, %v208
    %v210 = vpop.f32.mrb[0].mxu0
    %211 = vmatprep.mubr.f32.mxu0 0.0
    %212 = vmatmul.mubr.f32.gmra.mrb[0].mxu0 %v122
    %v213 = vpop.f32.mrb[0].mxu0
    %v214 = vadd.f32 %v115, %v213
    %v215 = vpop.f32.mrb[0].mxu0
    %216 = vmatprep.mubr.f32.mxu0 0.0
    %217 = vmatmul.mubr.f32.gmra.mrb[0].mxu0 %v125
    %v218 = vpop.f32.mrb[0].mxu0
    %v219 = vadd.f32 %v115, %v218
    %v220 = vpop.f32.mrb[0].mxu0
    %221 = vmatprep.mubr.f32.mxu0 0.0
    %222 = vmatmul.mubr.f32.gmra.mrb[0].mxu0 %v128
    %v223 = vpop.f32.mrb[0].mxu0
    %v224 = vadd.f32 %v115, %v223
    %v225 = vpop.f32.mrb[0].mxu0
    %226 = vmatprep.mubr.f32.mxu0 0.0
    %227 = vmatmul.mubr.f32.gmra.mrb[0].mxu0 %v131
    %v228 = vpop.f32.mrb[0].mxu0
    %v229 = vadd.f32 %v115, %v228
    %v230 = vpop.f32.mrb[0].mxu0
    %231 = vmatprep.mubr.f32.mxu0 0.0
    %232 = vmatmul.mubr.f32.gmra.mrb[0].mxu0 %v134
    %v233 = vpop.f32.mrb[0].mxu0
    %v234 = vadd.f32 %v115, %v233
    %v235 = vpop.f32.mrb[0].mxu0
    %236 = vmatprep.mubr.f32.mxu0 0.0
    %237 = vmatmul.mubr.f32.gmra.mrb[0].mxu0 %v137
    %v238 = vpop.f32.mrb[0].mxu0
    %v239 = vadd.f32 %v115, %v238
    %v240 = vpop.f32.mrb[0].mxu0
    %241 = vmatprep.mubr.f32.mxu0 0.0
    %242 = vmatmul.mubr.f32.gmra.mrb[0].mxu0 %v140
    %v243 = vpop.f32.mrb[0].mxu0
    %v244 = vadd.f32 %v115, %v243
    %v245 = vpop.f32.mrb[0].mxu0
    %246 = vdwg.mxu0
    %v247 = vadd.f32 %v209, 0.0
    %v248 = vxor.u32 %v247, 2147483648
    %v249 = vmul.f32 %v248, 1.442695
    %v250 = vpow.pop %v249
    %v251 = vadd.f32 %v250, 1.0
    %v252 = vrcp.pop %v251
    %v253 = vmul.f32 1.0, %v252
    %v254 = vadd.f32 %v87, 0.0
    %v255 = vmul.f32 %v253, %v254
    %257 = vrot.lane.b32.xlu0 %v255, 64
    %v258 = vpop.permute.xlu0 %257
    %v260 = vadd.f32 %v209, %v258
    %v261 = vtanh.pop %v260
    %v262 = vsub.f32 1.0, %v253
    %264 = vrot.lane.b32.xlu0 %v261, 96
    %v265 = vpop.permute.xlu0 %264
    %v267 = vmul.f32 %v262, %v265
    %v268 = vmul.f32 %v253, 0.0
    %v269 = vadd.f32 %v267, %v268
    %271 = vrot.lane.b32.xlu0 %v269, 96
    %v272 = vpop.permute.xlu0 %271
    %vm273 = vcmask 261120
    %v274 = vsel %vm273, %v272, 0
    %276 = vmatprep.subr.mxu0 0.0
    %277 = vmatpush1.msra.mxu0 %v65
    %278 = vmatprep.subr.mxu0 0.0
    %279 = vmatpush1.msra.mxu0 %v66
    %280 = vmatprep.subr.mxu0 0.0
    %281 = vmatpush1.msra.mxu0 %v67
    %282 = vmatprep.subr.mxu0 0.0
    %283 = vmatpush1.msra.mxu0 %v68
    %284 = vmatprep.subr.mxu0 0.0
    %285 = vmatpush1.msra.mxu0 0.0
    %286 = vmatprep.subr.mxu0 0.0
    %287 = vmatpush1.msra.mxu0 0.0
    %288 = vmatprep.subr.mxu0 0.0
    %289 = vmatpush1.msra.mxu0 0.0
    %290 = vmatprep.subr.mxu0 0.0
    %291 = vmatpush1.msra.mxu0 0.0
    %292 = vmatprep.subr.mxu0 0.0
    %293 = vmatpush1.msra.mxu0 0.0
    %294 = vmatprep.subr.mxu0 0.0
    %295 = vmatpush1.msra.mxu0 0.0
    %296 = vmatprep.subr.mxu0 0.0
    %297 = vmatpush1.msra.mxu0 0.0
    %298 = vmatprep.subr.mxu0 0.0
    %299 = vmatpush1.msra.mxu0 0.0
    %300 = vmatprep.subr.mxu0 0.0
    %301 = vmatpush1.msra.mxu0 0.0
    %302 = vmatprep.subr.mxu0 0.0
    %303 = vmatpush1.msra.mxu0 0.0
    %304 = vmatprep.subr.mxu0 0.0
    %305 = vmatpush1.msra.mxu0 0.0
    %306 = vmatprep.subr.mxu0 0.0
    %307 = vmatpush1.msra.mxu0 0.0
    %308 = vmatprep.subr.mxu0 0.0
    %309 = vmatpush1.msra.mxu0 0.0
    %310 = vmatprep.subr.mxu0 0.0
    %311 = vmatpush1.msra.mxu0 0.0
    %312 = vmatprep.subr.mxu0 0.0
    %313 = vmatpush1.msra.mxu0 0.0
    %314 = vmatprep.subr.mxu0 0.0
    %315 = vmatpush1.msra.mxu0 0.0
    %316 = vmatprep.subr.mxu0 0.0
    %317 = vmatpush1.msra.mxu0 0.0
    %318 = vmatprep.subr.mxu0 0.0
    %319 = vmatpush1.msra.mxu0 0.0
    %320 = vmatprep.subr.mxu0 0.0
    %321 = vmatpush1.msra.mxu0 0.0
    %322 = vmatprep.subr.mxu0 0.0
    %323 = vmatpush1.msra.mxu0 0.0
    %324 = vmatprep.subr.mxu0 0.0
    %325 = vmatpush1.msra.mxu0 0.0
    %326 = vmatprep.subr.mxu0 0.0
    %327 = vmatpush1.msra.mxu0 0.0
    %328 = vmatprep.subr.mxu0 0.0
    %329 = vmatpush1.msra.mxu0 0.0
    %330 = vmatprep.subr.mxu0 0.0
    %331 = vmatpush1.msra.mxu0 0.0
    %332 = vmatprep.subr.mxu0 0.0
    %333 = vmatpush1.msra.mxu0 0.0
    %334 = vmatprep.subr.mxu0 0.0
    %335 = vmatpush1.msra.mxu0 0.0
    %336 = vmatprep.subr.mxu0 0.0
    %337 = vmatpush1.msra.mxu0 0.0
    %338 = vmatprep.subr.mxu0 0.0
    %339 = vmatpush1.msra.mxu0 0.0
    %340 = vmatprep.mubr.f32.mxu0 0.0
    %341 = vmatmul.mubr.f32.gmra.mrb[0].mxu0 %v274
    %v342 = vpop.f32.mrb[0].mxu0
    %v343 = vadd.f32 0.0, %v342
    %v344 = vpop.f32.mrb[0].mxu0
    %345 = vdwg.mxu0
    %v346 = vadd.f32 %v214, %v343
    %v347 = vxor.u32 %v346, 2147483648
    %v348 = vmul.f32 %v347, 1.442695
    %v349 = vpow.pop %v348
    %v350 = vadd.f32 %v349, 1.0
    %v351 = vrcp.pop %v350
    %v352 = vmul.f32 1.0, %v351
    %353 = vrot.lane.b32.xlu0 %v87, 64
    %v354 = vpop.permute.xlu0 %353
    %v356 = vadd.f32 %v343, %v354
    %358 = vrot.lane.b32.xlu0 %v356, 64
    %v359 = vpop.permute.xlu0 %358
    %v361 = vmul.f32 %v352, %v359
    %363 = vrot.lane.b32.xlu0 %v361, 64
    %v364 = vpop.permute.xlu0 %363
    %v366 = vadd.f32 %v214, %v364
    %v367 = vtanh.pop %v366
    %v368 = vsub.f32 1.0, %v352
    %370 = vrot.lane.b32.xlu0 %v367, 96
    %v371 = vpop.permute.xlu0 %370
    %v373 = vmul.f32 %v368, %v371
    %v374 = vmul.f32 %v352, %v269
    %v375 = vadd.f32 %v373, %v374
    %377 = vrot.lane.b32.xlu0 %v375, 96
    %v378 = vpop.permute.xlu0 %377
    %v379 = vsel %vm273, %v378, 0
    %381 = vmatprep.subr.mxu0 0.0
    %382 = vmatpush1.msra.mxu0 %v65
    %383 = vmatprep.subr.mxu0 0.0
    %384 = vmatpush1.msra.mxu0 %v66
    %385 = vmatprep.subr.mxu0 0.0
    %386 = vmatpush1.msra.mxu0 %v67
    %387 = vmatprep.subr.mxu0 0.0
    %388 = vmatpush1.msra.mxu0 %v68
    %389 = vmatprep.subr.mxu0 0.0
    %390 = vmatpush1.msra.mxu0 0.0
    %391 = vmatprep.subr.mxu0 0.0
    %392 = vmatpush1.msra.mxu0 0.0
    %393 = vmatprep.subr.mxu0 0.0
    %394 = vmatpush1.msra.mxu0 0.0
    %395 = vmatprep.subr.mxu0 0.0
    %396 = vmatpush1.msra.mxu0 0.0
    %397 = vmatprep.subr.mxu0 0.0
    %398 = vmatpush1.msra.mxu0 0.0
    %399 = vmatprep.subr.mxu0 0.0
    %400 = vmatpush1.msra.mxu0 0.0
    %401 = vmatprep.subr.mxu0 0.0
    %402 = vmatpush1.msra.mxu0 0.0
    %403 = vmatprep.subr.mxu0 0.0
    %404 = vmatpush1.msra.mxu0 0.0
    %405 = vmatprep.subr.mxu0 0.0
    %406 = vmatpush1.msra.mxu0 0.0
    %407 = vmatprep.subr.mxu0 0.0
    %408 = vmatpush1.msra.mxu0 0.0
    %409 = vmatprep.subr.mxu0 0.0
    %410 = vmatpush1.msra.mxu0 0.0
    %411 = vmatprep.subr.mxu0 0.0
    %412 = vmatpush1.msra.mxu0 0.0
    %413 = vmatprep.subr.mxu0 0.0
    %414 = vmatpush1.msra.mxu0 0.0
    %415 = vmatprep.subr.mxu0 0.0
    %416 = vmatpush1.msra.mxu0 0.0
    %417 = vmatprep.subr.mxu0 0.0
    %418 = vmatpush1.msra.mxu0 0.0
    %419 = vmatprep.subr.mxu0 0.0
    %420 = vmatpush1.msra.mxu0 0.0
    %421 = vmatprep.subr.mxu0 0.0
    %422 = vmatpush1.msra.mxu0 0.0
    %423 = vmatprep.subr.mxu0 0.0
    %424 = vmatpush1.msra.mxu0 0.0
    %425 = vmatprep.subr.mxu0 0.0
    %426 = vmatpush1.msra.mxu0 0.0
    %427 = vmatprep.subr.mxu0 0.0
    %428 = vmatpush1.msra.mxu0 0.0
    %429 = vmatprep.subr.mxu0 0.0
    %430 = vmatpush1.msra.mxu0 0.0
    %431 = vmatprep.subr.mxu0 0.0
    %432 = vmatpush1.msra.mxu0 0.0
    %433 = vmatprep.subr.mxu0 0.0
    %434 = vmatpush1.msra.mxu0 0.0
    %435 = vmatprep.subr.mxu0 0.0
    %436 = vmatpush1.msra.mxu0 0.0
    %437 = vmatprep.subr.mxu0 0.0
    %438 = vmatpush1.msra.mxu0 0.0
    %439 = vmatprep.subr.mxu0 0.0
    %440 = vmatpush1.msra.mxu0 0.0
    %441 = vmatprep.subr.mxu0 0.0
    %442 = vmatpush1.msra.mxu0 0.0
    %443 = vmatprep.subr.mxu0 0.0
    %444 = vmatpush1.msra.mxu0 0.0
    %445 = vmatprep.mubr.f32.mxu0 0.0
    %446 = vmatmul.mubr.f32.gmra.mrb[0].mxu0 %v379
    %v447 = vpop.f32.mrb[0].mxu0
    %v448 = vadd.f32 0.0, %v447
    %v449 = vpop.f32.mrb[0].mxu0
    %450 = vdwg.mxu0
    %v451 = vadd.f32 %v219, %v448
    %v452 = vxor.u32 %v451, 2147483648
    %v453 = vmul.f32 %v452, 1.442695
    %v454 = vpow.pop %v453
    %v455 = vadd.f32 %v454, 1.0
    %v456 = vrcp.pop %v455
    %v457 = vmul.f32 1.0, %v456
    %v458 = vadd.f32 %v448, %v354
    %460 = vrot.lane.b32.xlu0 %v458, 64
    %v461 = vpop.permute.xlu0 %460
    %v463 = vmul.f32 %v457, %v461
    %465 = vrot.lane.b32.xlu0 %v463, 64
    %v466 = vpop.permute.xlu0 %465
    %v468 = vadd.f32 %v219, %v466
    %v469 = vtanh.pop %v468
    %v470 = vsub.f32 1.0, %v457
    %472 = vrot.lane.b32.xlu0 %v469, 96
    %v473 = vpop.permute.xlu0 %472
    %v475 = vmul.f32 %v470, %v473
    %v476 = vmul.f32 %v457, %v375
    %v477 = vadd.f32 %v475, %v476
    %479 = vrot.lane.b32.xlu0 %v477, 96
    %v480 = vpop.permute.xlu0 %479
    %v481 = vsel %vm273, %v480, 0
    %483 = vmatprep.subr.mxu0 0.0
    %484 = vmatpush1.msra.mxu0 %v65
    %485 = vmatprep.subr.mxu0 0.0
    %486 = vmatpush1.msra.mxu0 %v66
    %487 = vmatprep.subr.mxu0 0.0
    %488 = vmatpush1.msra.mxu0 %v67
    %489 = vmatprep.subr.mxu0 0.0
    %490 = vmatpush1.msra.mxu0 %v68
    %491 = vmatprep.subr.mxu0 0.0
    %492 = vmatpush1.msra.mxu0 0.0
    %493 = vmatprep.subr.mxu0 0.0
    %494 = vmatpush1.msra.mxu0 0.0
    %495 = vmatprep.subr.mxu0 0.0
    %496 = vmatpush1.msra.mxu0 0.0
    %497 = vmatprep.subr.mxu0 0.0
    %498 = vmatpush1.msra.mxu0 0.0
    %499 = vmatprep.subr.mxu0 0.0
    %500 = vmatpush1.msra.mxu0 0.0
    %501 = vmatprep.subr.mxu0 0.0
    %502 = vmatpush1.msra.mxu0 0.0
    %503 = vmatprep.subr.mxu0 0.0
    %504 = vmatpush1.msra.mxu0 0.0
    %505 = vmatprep.subr.mxu0 0.0
    %506 = vmatpush1.msra.mxu0 0.0
    %507 = vmatprep.subr.mxu0 0.0
    %508 = vmatpush1.msra.mxu0 0.0
    %509 = vmatprep.subr.mxu0 0.0
    %510 = vmatpush1.msra.mxu0 0.0
    %511 = vmatprep.subr.mxu0 0.0
    %512 = vmatpush1.msra.mxu0 0.0
    %513 = vmatprep.subr.mxu0 0.0
    %514 = vmatpush1.msra.mxu0 0.0
    %515 = vmatprep.subr.mxu0 0.0
    %516 = vmatpush1.msra.mxu0 0.0
    %517 = vmatprep.subr.mxu0 0.0
    %518 = vmatpush1.msra.mxu0 0.0
    %519 = vmatprep.subr.mxu0 0.0
    %520 = vmatpush1.msra.mxu0 0.0
    %521 = vmatprep.subr.mxu0 0.0
    %522 = vmatpush1.msra.mxu0 0.0
    %523 = vmatprep.subr.mxu0 0.0
    %524 = vmatpush1.msra.mxu0 0.0
    %525 = vmatprep.subr.mxu0 0.0
    %526 = vmatpush1.msra.mxu0 0.0
    %527 = vmatprep.subr.mxu0 0.0
    %528 = vmatpush1.msra.mxu0 0.0
    %529 = vmatprep.subr.mxu0 0.0
    %530 = vmatpush1.msra.mxu0 0.0
    %531 = vmatprep.subr.mxu0 0.0
    %532 = vmatpush1.msra.mxu0 0.0
    %533 = vmatprep.subr.mxu0 0.0
    %534 = vmatpush1.msra.mxu0 0.0
    %535 = vmatprep.subr.mxu0 0.0
    %536 = vmatpush1.msra.mxu0 0.0
    %537 = vmatprep.subr.mxu0 0.0
    %538 = vmatpush1.msra.mxu0 0.0
    %539 = vmatprep.subr.mxu0 0.0
    %540 = vmatpush1.msra.mxu0 0.0
    %541 = vmatprep.subr.mxu0 0.0
    %542 = vmatpush1.msra.mxu0 0.0
    %543 = vmatprep.subr.mxu0 0.0
    %544 = vmatpush1.msra.mxu0 0.0
    %545 = vmatprep.subr.mxu0 0.0
    %546 = vmatpush1.msra.mxu0 0.0
    %547 = vmatprep.mubr.f32.mxu0 0.0
    %548 = vmatmul.mubr.f32.gmra.mrb[0].mxu0 %v481
    %v549 = vpop.f32.mrb[0].mxu0
    %v550 = vadd.f32 0.0, %v549
    %v551 = vpop.f32.mrb[0].mxu0
    %552 = vdwg.mxu0
    %v553 = vadd.f32 %v224, %v550
    %v554 = vxor.u32 %v553, 2147483648
    %v555 = vmul.f32 %v554, 1.442695
    %v556 = vpow.pop %v555
    %v557 = vadd.f32 %v556, 1.0
    %v558 = vrcp.pop %v557
    %v559 = vmul.f32 1.0, %v558
    %v560 = vadd.f32 %v550, %v354
    %562 = vrot.lane.b32.xlu0 %v560, 64
    %v563 = vpop.permute.xlu0 %562
    %v565 = vmul.f32 %v559, %v563
    %567 = vrot.lane.b32.xlu0 %v565, 64
    %v568 = vpop.permute.xlu0 %567
    %v570 = vadd.f32 %v224, %v568
    %v571 = vtanh.pop %v570
    %v572 = vsub.f32 1.0, %v559
    %574 = vrot.lane.b32.xlu0 %v571, 96
    %v575 = vpop.permute.xlu0 %574
    %v577 = vmul.f32 %v572, %v575
    %v578 = vmul.f32 %v559, %v477
    %v579 = vadd.f32 %v577, %v578
    %581 = vrot.lane.b32.xlu0 %v579, 96
    %v582 = vpop.permute.xlu0 %581
    %v583 = vsel %vm273, %v582, 0
    %585 = vmatprep.subr.mxu0 0.0
    %586 = vmatpush1.msra.mxu0 %v65
    %587 = vmatprep.subr.mxu0 0.0
    %588 = vmatpush1.msra.mxu0 %v66
    %589 = vmatprep.subr.mxu0 0.0
    %590 = vmatpush1.msra.mxu0 %v67
    %591 = vmatprep.subr.mxu0 0.0
    %592 = vmatpush1.msra.mxu0 %v68
    %593 = vmatprep.subr.mxu0 0.0
    %594 = vmatpush1.msra.mxu0 0.0
    %595 = vmatprep.subr.mxu0 0.0
    %596 = vmatpush1.msra.mxu0 0.0
    %597 = vmatprep.subr.mxu0 0.0
    %598 = vmatpush1.msra.mxu0 0.0
    %599 = vmatprep.subr.mxu0 0.0
    %600 = vmatpush1.msra.mxu0 0.0
    %601 = vmatprep.subr.mxu0 0.0
    %602 = vmatpush1.msra.mxu0 0.0
    %603 = vmatprep.subr.mxu0 0.0
    %604 = vmatpush1.msra.mxu0 0.0
    %605 = vmatprep.subr.mxu0 0.0
    %606 = vmatpush1.msra.mxu0 0.0
    %607 = vmatprep.subr.mxu0 0.0
    %608 = vmatpush1.msra.mxu0 0.0
    %609 = vmatprep.subr.mxu0 0.0
    %610 = vmatpush1.msra.mxu0 0.0
    %611 = vmatprep.subr.mxu0 0.0
    %612 = vmatpush1.msra.mxu0 0.0
    %613 = vmatprep.subr.mxu0 0.0
    %614 = vmatpush1.msra.mxu0 0.0
    %615 = vmatprep.subr.mxu0 0.0
    %616 = vmatpush1.msra.mxu0 0.0
    %617 = vmatprep.subr.mxu0 0.0
    %618 = vmatpush1.msra.mxu0 0.0
    %619 = vmatprep.subr.mxu0 0.0
    %620 = vmatpush1.msra.mxu0 0.0
    %621 = vmatprep.subr.mxu0 0.0
    %622 = vmatpush1.msra.mxu0 0.0
    %623 = vmatprep.subr.mxu0 0.0
    %624 = vmatpush1.msra.mxu0 0.0
    %625 = vmatprep.subr.mxu0 0.0
    %626 = vmatpush1.msra.mxu0 0.0
    %627 = vmatprep.subr.mxu0 0.0
    %628 = vmatpush1.msra.mxu0 0.0
    %629 = vmatprep.subr.mxu0 0.0
    %630 = vmatpush1.msra.mxu0 0.0
    %631 = vmatprep.subr.mxu0 0.0
    %632 = vmatpush1.msra.mxu0 0.0
    %633 = vmatprep.subr.mxu0 0.0
    %634 = vmatpush1.msra.mxu0 0.0
    %635 = vmatprep.subr.mxu0 0.0
    %636 = vmatpush1.msra.mxu0 0.0
    %637 = vmatprep.subr.mxu0 0.0
    %638 = vmatpush1.msra.mxu0 0.0
    %639 = vmatprep.subr.mxu0 0.0
    %640 = vmatpush1.msra.mxu0 0.0
    %641 = vmatprep.subr.mxu0 0.0
    %642 = vmatpush1.msra.mxu0 0.0
    %643 = vmatprep.subr.mxu0 0.0
    %644 = vmatpush1.msra.mxu0 0.0
    %645 = vmatprep.subr.mxu0 0.0
    %646 = vmatpush1.msra.mxu0 0.0
    %647 = vmatprep.subr.mxu0 0.0
    %648 = vmatpush1.msra.mxu0 0.0
    %649 = vmatprep.mubr.f32.mxu0 0.0
    %650 = vmatmul.mubr.f32.gmra.mrb[0].mxu0 %v583
    %v651 = vpop.f32.mrb[0].mxu0
    %v652 = vadd.f32 0.0, %v651
    %v653 = vpop.f32.mrb[0].mxu0
    %654 = vdwg.mxu0
    %v655 = vadd.f32 %v229, %v652
    %v656 = vxor.u32 %v655, 2147483648
    %v657 = vmul.f32 %v656, 1.442695
    %v658 = vpow.pop %v657
    %v659 = vadd.f32 %v658, 1.0
    %v660 = vrcp.pop %v659
    %v661 = vmul.f32 1.0, %v660
    %v662 = vadd.f32 %v652, %v354
    %664 = vrot.lane.b32.xlu0 %v662, 64
    %v665 = vpop.permute.xlu0 %664
    %v667 = vmul.f32 %v661, %v665
    %669 = vrot.lane.b32.xlu0 %v667, 64
    %v670 = vpop.permute.xlu0 %669
    %v672 = vadd.f32 %v229, %v670
    %v673 = vtanh.pop %v672
    %v674 = vsub.f32 1.0, %v661
    %676 = vrot.lane.b32.xlu0 %v673, 96
    %v677 = vpop.permute.xlu0 %676
    %v679 = vmul.f32 %v674, %v677
    %v680 = vmul.f32 %v661, %v579
    %v681 = vadd.f32 %v679, %v680
    %683 = vrot.lane.b32.xlu0 %v681, 96
    %v684 = vpop.permute.xlu0 %683
    %v685 = vsel %vm273, %v684, 0
    %687 = vmatprep.subr.mxu0 0.0
    %688 = vmatpush1.msra.mxu0 %v65
    %689 = vmatprep.subr.mxu0 0.0
    %690 = vmatpush1.msra.mxu0 %v66
    %691 = vmatprep.subr.mxu0 0.0
    %692 = vmatpush1.msra.mxu0 %v67
    %693 = vmatprep.subr.mxu0 0.0
    %694 = vmatpush1.msra.mxu0 %v68
    %695 = vmatprep.subr.mxu0 0.0
    %696 = vmatpush1.msra.mxu0 0.0
    %697 = vmatprep.subr.mxu0 0.0
    %698 = vmatpush1.msra.mxu0 0.0
    %699 = vmatprep.subr.mxu0 0.0
    %700 = vmatpush1.msra.mxu0 0.0
    %701 = vmatprep.subr.mxu0 0.0
    %702 = vmatpush1.msra.mxu0 0.0
    %703 = vmatprep.subr.mxu0 0.0
    %704 = vmatpush1.msra.mxu0 0.0
    %705 = vmatprep.subr.mxu0 0.0
    %706 = vmatpush1.msra.mxu0 0.0
    %707 = vmatprep.subr.mxu0 0.0
    %708 = vmatpush1.msra.mxu0 0.0
    %709 = vmatprep.subr.mxu0 0.0
    %710 = vmatpush1.msra.mxu0 0.0
    %711 = vmatprep.subr.mxu0 0.0
    %712 = vmatpush1.msra.mxu0 0.0
    %713 = vmatprep.subr.mxu0 0.0
    %714 = vmatpush1.msra.mxu0 0.0
    %715 = vmatprep.subr.mxu0 0.0
    %716 = vmatpush1.msra.mxu0 0.0
    %717 = vmatprep.subr.mxu0 0.0
    %718 = vmatpush1.msra.mxu0 0.0
    %719 = vmatprep.subr.mxu0 0.0
    %720 = vmatpush1.msra.mxu0 0.0
    %721 = vmatprep.subr.mxu0 0.0
    %722 = vmatpush1.msra.mxu0 0.0
    %723 = vmatprep.subr.mxu0 0.0
    %724 = vmatpush1.msra.mxu0 0.0
    %725 = vmatprep.subr.mxu0 0.0
    %726 = vmatpush1.msra.mxu0 0.0
    %727 = vmatprep.subr.mxu0 0.0
    %728 = vmatpush1.msra.mxu0 0.0
    %729 = vmatprep.subr.mxu0 0.0
    %730 = vmatpush1.msra.mxu0 0.0
    %731 = vmatprep.subr.mxu0 0.0
    %732 = vmatpush1.msra.mxu0 0.0
    %733 = vmatprep.subr.mxu0 0.0
    %734 = vmatpush1.msra.mxu0 0.0
    %735 = vmatprep.subr.mxu0 0.0
    %736 = vmatpush1.msra.mxu0 0.0
    %737 = vmatprep.subr.mxu0 0.0
    %738 = vmatpush1.msra.mxu0 0.0
    %739 = vmatprep.subr.mxu0 0.0
    %740 = vmatpush1.msra.mxu0 0.0
    %741 = vmatprep.subr.mxu0 0.0
    %742 = vmatpush1.msra.mxu0 0.0
    %743 = vmatprep.subr.mxu0 0.0
    %744 = vmatpush1.msra.mxu0 0.0
    %745 = vmatprep.subr.mxu0 0.0
    %746 = vmatpush1.msra.mxu0 0.0
    %747 = vmatprep.subr.mxu0 0.0
    %748 = vmatpush1.msra.mxu0 0.0
    %749 = vmatprep.subr.mxu0 0.0
    %750 = vmatpush1.msra.mxu0 0.0
    %751 = vmatprep.mubr.f32.mxu0 0.0
    %752 = vmatmul.mubr.f32.gmra.mrb[0].mxu0 %v685
    %v753 = vpop.f32.mrb[0].mxu0
    %v754 = vadd.f32 0.0, %v753
    %v755 = vpop.f32.mrb[0].mxu0
    %756 = vdwg.mxu0
    %v757 = vadd.f32 %v234, %v754
    %v758 = vxor.u32 %v757, 2147483648
    %v759 = vmul.f32 %v758, 1.442695
    %v760 = vpow.pop %v759
    %v761 = vadd.f32 %v760, 1.0
    %v762 = vrcp.pop %v761
    %v763 = vmul.f32 1.0, %v762
    %v764 = vadd.f32 %v754, %v354
    %766 = vrot.lane.b32.xlu0 %v764, 64
    %v767 = vpop.permute.xlu0 %766
    %v769 = vmul.f32 %v763, %v767
    %771 = vrot.lane.b32.xlu0 %v769, 64
    %v772 = vpop.permute.xlu0 %771
    %v774 = vadd.f32 %v234, %v772
    %v775 = vtanh.pop %v774
    %v776 = vsub.f32 1.0, %v763
    %778 = vrot.lane.b32.xlu0 %v775, 96
    %v779 = vpop.permute.xlu0 %778
    %v781 = vmul.f32 %v776, %v779
    %v782 = vmul.f32 %v763, %v681
    %v783 = vadd.f32 %v781, %v782
    %785 = vrot.lane.b32.xlu0 %v783, 96
    %v786 = vpop.permute.xlu0 %785
    %v787 = vsel %vm273, %v786, 0
    %789 = vmatprep.subr.mxu0 0.0
    %790 = vmatpush1.msra.mxu0 %v65
    %791 = vmatprep.subr.mxu0 0.0
    %792 = vmatpush1.msra.mxu0 %v66
    %793 = vmatprep.subr.mxu0 0.0
    %794 = vmatpush1.msra.mxu0 %v67
    %795 = vmatprep.subr.mxu0 0.0
    %796 = vmatpush1.msra.mxu0 %v68
    %797 = vmatprep.subr.mxu0 0.0
    %798 = vmatpush1.msra.mxu0 0.0
    %799 = vmatprep.subr.mxu0 0.0
    %800 = vmatpush1.msra.mxu0 0.0
    %801 = vmatprep.subr.mxu0 0.0
    %802 = vmatpush1.msra.mxu0 0.0
    %803 = vmatprep.subr.mxu0 0.0
    %804 = vmatpush1.msra.mxu0 0.0
    %805 = vmatprep.subr.mxu0 0.0
    %806 = vmatpush1.msra.mxu0 0.0
    %807 = vmatprep.subr.mxu0 0.0
    %808 = vmatpush1.msra.mxu0 0.0
    %809 = vmatprep.subr.mxu0 0.0
    %810 = vmatpush1.msra.mxu0 0.0
    %811 = vmatprep.subr.mxu0 0.0
    %812 = vmatpush1.msra.mxu0 0.0
    %813 = vmatprep.subr.mxu0 0.0
    %814 = vmatpush1.msra.mxu0 0.0
    %815 = vmatprep.subr.mxu0 0.0
    %816 = vmatpush1.msra.mxu0 0.0
    %817 = vmatprep.subr.mxu0 0.0
    %818 = vmatpush1.msra.mxu0 0.0
    %819 = vmatprep.subr.mxu0 0.0
    %820 = vmatpush1.msra.mxu0 0.0
    %821 = vmatprep.subr.mxu0 0.0
    %822 = vmatpush1.msra.mxu0 0.0
    %823 = vmatprep.subr.mxu0 0.0
    %824 = vmatpush1.msra.mxu0 0.0
    %825 = vmatprep.subr.mxu0 0.0
    %826 = vmatpush1.msra.mxu0 0.0
    %827 = vmatprep.subr.mxu0 0.0
    %828 = vmatpush1.msra.mxu0 0.0
    %829 = vmatprep.subr.mxu0 0.0
    %830 = vmatpush1.msra.mxu0 0.0
    %831 = vmatprep.subr.mxu0 0.0
    %832 = vmatpush1.msra.mxu0 0.0
    %833 = vmatprep.subr.mxu0 0.0
    %834 = vmatpush1.msra.mxu0 0.0
    %835 = vmatprep.subr.mxu0 0.0
    %836 = vmatpush1.msra.mxu0 0.0
    %837 = vmatprep.subr.mxu0 0.0
    %838 = vmatpush1.msra.mxu0 0.0
    %839 = vmatprep.subr.mxu0 0.0
    %840 = vmatpush1.msra.mxu0 0.0
    %841 = vmatprep.subr.mxu0 0.0
    %842 = vmatpush1.msra.mxu0 0.0
    %843 = vmatprep.subr.mxu0 0.0
    %844 = vmatpush1.msra.mxu0 0.0
    %845 = vmatprep.subr.mxu0 0.0
    %846 = vmatpush1.msra.mxu0 0.0
    %847 = vmatprep.subr.mxu0 0.0
    %848 = vmatpush1.msra.mxu0 0.0
    %849 = vmatprep.subr.mxu0 0.0
    %850 = vmatpush1.msra.mxu0 0.0
    %851 = vmatprep.subr.mxu0 0.0
    %852 = vmatpush1.msra.mxu0 0.0
    %853 = vmatprep.mubr.f32.mxu0 0.0
    %854 = vmatmul.mubr.f32.gmra.mrb[0].mxu0 %v787
    %v855 = vpop.f32.mrb[0].mxu0
    %v856 = vadd.f32 0.0, %v855
    %v857 = vpop.f32.mrb[0].mxu0
    %858 = vdwg.mxu0
    %v859 = vadd.f32 %v239, %v856
    %v860 = vxor.u32 %v859, 2147483648
    %v861 = vmul.f32 %v860, 1.442695
    %v862 = vpow.pop %v861
    %v863 = vadd.f32 %v862, 1.0
    %v864 = vrcp.pop %v863
    %v865 = vmul.f32 1.0, %v864
    %v866 = vadd.f32 %v856, %v354
    %868 = vrot.lane.b32.xlu0 %v866, 64
    %v869 = vpop.permute.xlu0 %868
    %v871 = vmul.f32 %v865, %v869
    %873 = vrot.lane.b32.xlu0 %v871, 64
    %v874 = vpop.permute.xlu0 %873
    %v876 = vadd.f32 %v239, %v874
    %v877 = vtanh.pop %v876
    %v878 = vsub.f32 1.0, %v865
    %880 = vrot.lane.b32.xlu0 %v877, 96
    %v881 = vpop.permute.xlu0 %880
    %v883 = vmul.f32 %v878, %v881
    %v884 = vmul.f32 %v865, %v783
    %v885 = vadd.f32 %v883, %v884
    %887 = vrot.lane.b32.xlu0 %v885, 96
    %v888 = vpop.permute.xlu0 %887
    %v889 = vsel %vm273, %v888, 0
    %891 = vmatprep.subr.mxu0 0.0
    %892 = vmatpush1.msra.mxu0 %v65
    %893 = vmatprep.subr.mxu0 0.0
    %894 = vmatpush1.msra.mxu0 %v66
    %895 = vmatprep.subr.mxu0 0.0
    %896 = vmatpush1.msra.mxu0 %v67
    %897 = vmatprep.subr.mxu0 0.0
    %898 = vmatpush1.msra.mxu0 %v68
    %899 = vmatprep.subr.mxu0 0.0
    %900 = vmatpush1.msra.mxu0 0.0
    %901 = vmatprep.subr.mxu0 0.0
    %902 = vmatpush1.msra.mxu0 0.0
    %903 = vmatprep.subr.mxu0 0.0
    %904 = vmatpush1.msra.mxu0 0.0
    %905 = vmatprep.subr.mxu0 0.0
    %906 = vmatpush1.msra.mxu0 0.0
    %907 = vmatprep.subr.mxu0 0.0
    %908 = vmatpush1.msra.mxu0 0.0
    %909 = vmatprep.subr.mxu0 0.0
    %910 = vmatpush1.msra.mxu0 0.0
    %911 = vmatprep.subr.mxu0 0.0
    %912 = vmatpush1.msra.mxu0 0.0
    %913 = vmatprep.subr.mxu0 0.0
    %914 = vmatpush1.msra.mxu0 0.0
    %915 = vmatprep.subr.mxu0 0.0
    %916 = vmatpush1.msra.mxu0 0.0
    %917 = vmatprep.subr.mxu0 0.0
    %918 = vmatpush1.msra.mxu0 0.0
    %919 = vmatprep.subr.mxu0 0.0
    %920 = vmatpush1.msra.mxu0 0.0
    %921 = vmatprep.subr.mxu0 0.0
    %922 = vmatpush1.msra.mxu0 0.0
    %923 = vmatprep.subr.mxu0 0.0
    %924 = vmatpush1.msra.mxu0 0.0
    %925 = vmatprep.subr.mxu0 0.0
    %926 = vmatpush1.msra.mxu0 0.0
    %927 = vmatprep.subr.mxu0 0.0
    %928 = vmatpush1.msra.mxu0 0.0
    %929 = vmatprep.subr.mxu0 0.0
    %930 = vmatpush1.msra.mxu0 0.0
    %931 = vmatprep.subr.mxu0 0.0
    %932 = vmatpush1.msra.mxu0 0.0
    %933 = vmatprep.subr.mxu0 0.0
    %934 = vmatpush1.msra.mxu0 0.0
    %935 = vmatprep.subr.mxu0 0.0
    %936 = vmatpush1.msra.mxu0 0.0
    %937 = vmatprep.subr.mxu0 0.0
    %938 = vmatpush1.msra.mxu0 0.0
    %939 = vmatprep.subr.mxu0 0.0
    %940 = vmatpush1.msra.mxu0 0.0
    %941 = vmatprep.subr.mxu0 0.0
    %942 = vmatpush1.msra.mxu0 0.0
    %943 = vmatprep.subr.mxu0 0.0
    %944 = vmatpush1.msra.mxu0 0.0
    %945 = vmatprep.subr.mxu0 0.0
    %946 = vmatpush1.msra.mxu0 0.0
    %947 = vmatprep.subr.mxu0 0.0
    %948 = vmatpush1.msra.mxu0 0.0
    %949 = vmatprep.subr.mxu0 0.0
    %950 = vmatpush1.msra.mxu0 0.0
    %951 = vmatprep.subr.mxu0 0.0
    %952 = vmatpush1.msra.mxu0 0.0
    %953 = vmatprep.subr.mxu0 0.0
    %954 = vmatpush1.msra.mxu0 0.0
    %955 = vmatprep.mubr.f32.mxu0 0.0
    %956 = vmatmul.mubr.f32.gmra.mrb[0].mxu0 %v889
    %v957 = vpop.f32.mrb[0].mxu0
    %v958 = vadd.f32 0.0, %v957
    %v959 = vpop.f32.mrb[0].mxu0
    %960 = vdwg.mxu0
    %v961 = vadd.f32 %v244, %v958
    %v962 = vxor.u32 %v961, 2147483648
    %v963 = vmul.f32 %v962, 1.442695
    %v964 = vpow.pop %v963
    %v965 = vadd.f32 %v964, 1.0
    %v966 = vrcp.pop %v965
    %v967 = vmul.f32 1.0, %v966
    %v968 = vadd.f32 %v958, %v354
    %970 = vrot.lane.b32.xlu0 %v968, 64
    %v971 = vpop.permute.xlu0 %970
    %v973 = vmul.f32 %v967, %v971
    %975 = vrot.lane.b32.xlu0 %v973, 64
    %v976 = vpop.permute.xlu0 %975
    %v978 = vadd.f32 %v244, %v976
    %v979 = vtanh.pop %v978
    %v980 = vsub.f32 1.0, %v967
    %982 = vrot.lane.b32.xlu0 %v979, 96
    %v983 = vpop.permute.xlu0 %982
    %v985 = vmul.f32 %v980, %v983
    %v986 = vmul.f32 %v967, %v885
    %v987 = vadd.f32 %v985, %v986
    %989 = vrot.lane.b32.xlu0 %v987, 96
    %v990 = vpop.permute.xlu0 %989
    %v991 = vsel %vm273, %v990, 0
    %993 = vmatprep.subr.mxu0 %v70
    %994 = vmatpush1.msra.mxu0 %v69
    %995 = vmatprep.subr.mxu0 %v73
    %996 = vmatpush1.msra.mxu0 %v72
    %997 = vmatprep.subr.mxu0 %v76
    %998 = vmatpush1.msra.mxu0 %v75
    %999 = vmatprep.subr.mxu0 %v79
    %1000 = vmatpush1.msra.mxu0 %v78
    %1001 = vmatprep.subr.mxu0 0.0
    %1002 = vmatpush1.msra.mxu0 0.0
    %1003 = vmatprep.subr.mxu0 0.0
    %1004 = vmatpush1.msra.mxu0 0.0
    %1005 = vmatprep.subr.mxu0 0.0
    %1006 = vmatpush1.msra.mxu0 0.0
    %1007 = vmatprep.subr.mxu0 0.0
    %1008 = vmatpush1.msra.mxu0 0.0
    %1009 = vmatprep.subr.mxu0 0.0
    %1010 = vmatpush1.msra.mxu0 0.0
    %1011 = vmatprep.subr.mxu0 0.0
    %1012 = vmatpush1.msra.mxu0 0.0
    %1013 = vmatprep.subr.mxu0 0.0
    %1014 = vmatpush1.msra.mxu0 0.0
    %1015 = vmatprep.subr.mxu0 0.0
    %1016 = vmatpush1.msra.mxu0 0.0
    %1017 = vmatprep.subr.mxu0 0.0
    %1018 = vmatpush1.msra.mxu0 0.0
    %1019 = vmatprep.subr.mxu0 0.0
    %1020 = vmatpush1.msra.mxu0 0.0
    %1021 = vmatprep.subr.mxu0 0.0
    %1022 = vmatpush1.msra.mxu0 0.0
    %1023 = vmatprep.subr.mxu0 0.0
    %1024 = vmatpush1.msra.mxu0 0.0
    %1025 = vmatprep.subr.mxu0 0.0
    %1026 = vmatpush1.msra.mxu0 0.0
    %1027 = vmatprep.subr.mxu0 0.0
    %1028 = vmatpush1.msra.mxu0 0.0
    %1029 = vmatprep.subr.mxu0 0.0
    %1030 = vmatpush1.msra.mxu0 0.0
    %1031 = vmatprep.subr.mxu0 0.0
    %1032 = vmatpush1.msra.mxu0 0.0
    %1033 = vmatprep.subr.mxu0 0.0
    %1034 = vmatpush1.msra.mxu0 0.0
    %1035 = vmatprep.subr.mxu0 0.0
    %1036 = vmatpush1.msra.mxu0 0.0
    %1037 = vmatprep.subr.mxu0 0.0
    %1038 = vmatpush1.msra.mxu0 0.0
    %1039 = vmatprep.subr.mxu0 0.0
    %1040 = vmatpush1.msra.mxu0 0.0
    %1041 = vmatprep.subr.mxu0 0.0
    %1042 = vmatpush1.msra.mxu0 0.0
    %1043 = vmatprep.subr.mxu0 0.0
    %1044 = vmatpush1.msra.mxu0 0.0
    %1045 = vmatprep.subr.mxu0 0.0
    %1046 = vmatpush1.msra.mxu0 0.0
    %1047 = vmatprep.subr.mxu0 0.0
    %1048 = vmatpush1.msra.mxu0 0.0
    %1049 = vmatprep.subr.mxu0 0.0
    %1050 = vmatpush1.msra.mxu0 0.0
    %1051 = vmatprep.subr.mxu0 0.0
    %1052 = vmatpush1.msra.mxu0 0.0
    %1053 = vmatprep.subr.mxu0 0.0
    %1054 = vmatpush1.msra.mxu0 0.0
    %1055 = vmatprep.subr.mxu0 0.0
    %1056 = vmatpush1.msra.mxu0 0.0
    %1057 = vmatprep.mubr.f32.mxu0 0.0
    %1058 = vmatmul.mubr.f32.gmra.mrb[0].mxu0 %v991
    %v1059 = vpop.f32.mrb[0].mxu0
    %v1060 = vadd.f32 0.0, %v1059
    %v1061 = vpop.f32.mrb[0].mxu0
    %v1062 = vadd.f32 0.0, %v1061
    %1063 = vdwg.mxu0
    %1064 = vmatprep.subr.mxu0 0.0
    %1065 = vmatpush1.msra.mxu0 %v71
    %1066 = vmatprep.subr.mxu0 0.0
    %1067 = vmatpush1.msra.mxu0 %v74
    %1068 = vmatprep.subr.mxu0 0.0
    %1069 = vmatpush1.msra.mxu0 %v77
    %1070 = vmatprep.subr.mxu0 0.0
    %1071 = vmatpush1.msra.mxu0 %v80
    %1072 = vmatprep.subr.mxu0 0.0
    %1073 = vmatpush1.msra.mxu0 0.0
    %1074 = vmatprep.subr.mxu0 0.0
    %1075 = vmatpush1.msra.mxu0 0.0
    %1076 = vmatprep.subr.mxu0 0.0
    %1077 = vmatpush1.msra.mxu0 0.0
    %1078 = vmatprep.subr.mxu0 0.0
    %1079 = vmatpush1.msra.mxu0 0.0
    %1080 = vmatprep.subr.mxu0 0.0
    %1081 = vmatpush1.msra.mxu0 0.0
    %1082 = vmatprep.subr.mxu0 0.0
    %1083 = vmatpush1.msra.mxu0 0.0
    %1084 = vmatprep.subr.mxu0 0.0
    %1085 = vmatpush1.msra.mxu0 0.0
    %1086 = vmatprep.subr.mxu0 0.0
    %1087 = vmatpush1.msra.mxu0 0.0
    %1088 = vmatprep.subr.mxu0 0.0
    %1089 = vmatpush1.msra.mxu0 0.0
    %1090 = vmatprep.subr.mxu0 0.0
    %1091 = vmatpush1.msra.mxu0 0.0
    %1092 = vmatprep.subr.mxu0 0.0
    %1093 = vmatpush1.msra.mxu0 0.0
    %1094 = vmatprep.subr.mxu0 0.0
    %1095 = vmatpush1.msra.mxu0 0.0
    %1096 = vmatprep.subr.mxu0 0.0
    %1097 = vmatpush1.msra.mxu0 0.0
    %1098 = vmatprep.subr.mxu0 0.0
    %1099 = vmatpush1.msra.mxu0 0.0
    %1100 = vmatprep.subr.mxu0 0.0
    %1101 = vmatpush1.msra.mxu0 0.0
    %1102 = vmatprep.subr.mxu0 0.0
    %1103 = vmatpush1.msra.mxu0 0.0
    %1104 = vmatprep.subr.mxu0 0.0
    %1105 = vmatpush1.msra.mxu0 0.0
    %1106 = vmatprep.subr.mxu0 0.0
    %1107 = vmatpush1.msra.mxu0 0.0
    %1108 = vmatprep.subr.mxu0 0.0
    %1109 = vmatpush1.msra.mxu0 0.0
    %1110 = vmatprep.subr.mxu0 0.0
    %1111 = vmatpush1.msra.mxu0 0.0
    %1112 = vmatprep.subr.mxu0 0.0
    %1113 = vmatpush1.msra.mxu0 0.0
    %1114 = vmatprep.subr.mxu0 0.0
    %1115 = vmatpush1.msra.mxu0 0.0
    %1116 = vmatprep.subr.mxu0 0.0
    %1117 = vmatpush1.msra.mxu0 0.0
    %1118 = vmatprep.subr.mxu0 0.0
    %1119 = vmatpush1.msra.mxu0 0.0
    %1120 = vmatprep.subr.mxu0 0.0
    %1121 = vmatpush1.msra.mxu0 0.0
    %1122 = vmatprep.subr.mxu0 0.0
    %1123 = vmatpush1.msra.mxu0 0.0
    %1124 = vmatprep.subr.mxu0 0.0
    %1125 = vmatpush1.msra.mxu0 0.0
    %1126 = vmatprep.subr.mxu0 0.0
    %1127 = vmatpush1.msra.mxu0 0.0
    %1128 = vmatprep.mubr.f32.mxu0 0.0
    %1129 = vmatmul.mubr.f32.gmra.mrb[0].mxu0 %v991
    %v1130 = vpop.f32.mrb[0].mxu0
    %v1131 = vadd.f32 0.0, %v1130
    %v1132 = vpop.f32.mrb[0].mxu0
    %1133 = vdwg.mxu0
    %v1134 = vadd.f32 %v110, %v1131
    %v1135 = vadd.f32 %v1134, %v101
    %v1136 = vadd.f32 %v244, %v1062
    %v1137 = vadd.f32 %v1136, %v94
    %v1138 = vadd.f32 %v1137, %v1060
    %v1139 = vxor.u32 %v1138, 2147483648
    %v1140 = vmul.f32 %v1139, 1.442695
    %v1141 = vpow.pop %v1140
    %v1142 = vadd.f32 %v1141, 1.0
    %v1143 = vrcp.pop %v1142
    %v1144 = vmul.f32 1.0, %v1143
    %v1145 = vadd.f32 %v1060, %v354
    %1147 = vrot.lane.b32.xlu0 %v1145, 64
    %v1148 = vpop.permute.xlu0 %1147
    %v1150 = vmul.f32 %v1144, %v1148
    %1152 = vrot.lane.b32.xlu0 %v1150, 64
    %v1153 = vpop.permute.xlu0 %1152
    %v1155 = vadd.f32 %v1137, %v1153
    %v1156 = vtanh.pop %v1155
    %v1157 = vsub.f32 1.0, %v1144
    %1159 = vrot.lane.b32.xlu0 %v1156, 96
    %v1160 = vpop.permute.xlu0 %1159
    %v1162 = vmul.f32 %v1157, %v1160
    %v1163 = vmul.f32 %v1144, %v987
    %v1164 = vadd.f32 %v1162, %v1163
    %1166 = vrot.lane.b32.xlu0 %v1164, 96
    %v1167 = vpop.permute.xlu0 %1166
    %v1168 = vsel %vm273, %v1167, 0
    %1170 = vmatprep.subr.mxu0 %v70
    %1171 = vmatpush1.msra.mxu0 %v69
    %1172 = vmatprep.subr.mxu0 %v73
    %1173 = vmatpush1.msra.mxu0 %v72
    %1174 = vmatprep.subr.mxu0 %v76
    %1175 = vmatpush1.msra.mxu0 %v75
    %1176 = vmatprep.subr.mxu0 %v79
    %1177 = vmatpush1.msra.mxu0 %v78
    %1178 = vmatprep.subr.mxu0 0.0
    %1179 = vmatpush1.msra.mxu0 0.0
    %1180 = vmatprep.subr.mxu0 0.0
    %1181 = vmatpush1.msra.mxu0 0.0
    %1182 = vmatprep.subr.mxu0 0.0
    %1183 = vmatpush1.msra.mxu0 0.0
    %1184 = vmatprep.subr.mxu0 0.0
    %1185 = vmatpush1.msra.mxu0 0.0
    %1186 = vmatprep.subr.mxu0 0.0
    %1187 = vmatpush1.msra.mxu0 0.0
    %1188 = vmatprep.subr.mxu0 0.0
    %1189 = vmatpush1.msra.mxu0 0.0
    %1190 = vmatprep.subr.mxu0 0.0
    %1191 = vmatpush1.msra.mxu0 0.0
    %1192 = vmatprep.subr.mxu0 0.0
    %1193 = vmatpush1.msra.mxu0 0.0
    %1194 = vmatprep.subr.mxu0 0.0
    %1195 = vmatpush1.msra.mxu0 0.0
    %1196 = vmatprep.subr.mxu0 0.0
    %1197 = vmatpush1.msra.mxu0 0.0
    %1198 = vmatprep.subr.mxu0 0.0
    %1199 = vmatpush1.msra.mxu0 0.0
    %1200 = vmatprep.subr.mxu0 0.0
    %1201 = vmatpush1.msra.mxu0 0.0
    %1202 = vmatprep.subr.mxu0 0.0
    %1203 = vmatpush1.msra.mxu0 0.0
    %1204 = vmatprep.subr.mxu0 0.0
    %1205 = vmatpush1.msra.mxu0 0.0
    %1206 = vmatprep.subr.mxu0 0.0
    %1207 = vmatpush1.msra.mxu0 0.0
    %1208 = vmatprep.subr.mxu0 0.0
    %1209 = vmatpush1.msra.mxu0 0.0
    %1210 = vmatprep.subr.mxu0 0.0
    %1211 = vmatpush1.msra.mxu0 0.0
    %1212 = vmatprep.subr.mxu0 0.0
    %1213 = vmatpush1.msra.mxu0 0.0
    %1214 = vmatprep.subr.mxu0 0.0
    %1215 = vmatpush1.msra.mxu0 0.0
    %1216 = vmatprep.subr.mxu0 0.0
    %1217 = vmatpush1.msra.mxu0 0.0
    %1218 = vmatprep.subr.mxu0 0.0
    %1219 = vmatpush1.msra.mxu0 0.0
    %1220 = vmatprep.subr.mxu0 0.0
    %1221 = vmatpush1.msra.mxu0 0.0
    %1222 = vmatprep.subr.mxu0 0.0
    %1223 = vmatpush1.msra.mxu0 0.0
    %1224 = vmatprep.subr.mxu0 0.0
    %1225 = vmatpush1.msra.mxu0 0.0
    %1226 = vmatprep.subr.mxu0 0.0
    %1227 = vmatpush1.msra.mxu0 0.0
    %1228 = vmatprep.subr.mxu0 0.0
    %1229 = vmatpush1.msra.mxu0 0.0
    %1230 = vmatprep.subr.mxu0 0.0
    %1231 = vmatpush1.msra.mxu0 0.0
    %1232 = vmatprep.subr.mxu0 0.0
    %1233 = vmatpush1.msra.mxu0 0.0
    %1234 = vmatprep.mubr.f32.mxu0 0.0
    %1235 = vmatmul.mubr.f32.gmra.mrb[0].mxu0 %v1168
    %v1236 = vpop.f32.mrb[0].mxu0
    %v1237 = vadd.f32 0.0, %v1236
    %v1238 = vpop.f32.mrb[0].mxu0
    %v1239 = vadd.f32 0.0, %v1238
    %1240 = vdwg.mxu0
    %1241 = vmatprep.subr.mxu0 0.0
    %1242 = vmatpush1.msra.mxu0 %v71
    %1243 = vmatprep.subr.mxu0 0.0
    %1244 = vmatpush1.msra.mxu0 %v74
    %1245 = vmatprep.subr.mxu0 0.0
    %1246 = vmatpush1.msra.mxu0 %v77
    %1247 = vmatprep.subr.mxu0 0.0
    %1248 = vmatpush1.msra.mxu0 %v80
    %1249 = vmatprep.subr.mxu0 0.0
    %1250 = vmatpush1.msra.mxu0 0.0
    %1251 = vmatprep.subr.mxu0 0.0
    %1252 = vmatpush1.msra.mxu0 0.0
    %1253 = vmatprep.subr.mxu0 0.0
    %1254 = vmatpush1.msra.mxu0 0.0
    %1255 = vmatprep.subr.mxu0 0.0
    %1256 = vmatpush1.msra.mxu0 0.0
    %1257 = vmatprep.subr.mxu0 0.0
    %1258 = vmatpush1.msra.mxu0 0.0
    %1259 = vmatprep.subr.mxu0 0.0
    %1260 = vmatpush1.msra.mxu0 0.0
    %1261 = vmatprep.subr.mxu0 0.0
    %1262 = vmatpush1.msra.mxu0 0.0
    %1263 = vmatprep.subr.mxu0 0.0
    %1264 = vmatpush1.msra.mxu0 0.0
    %1265 = vmatprep.subr.mxu0 0.0
    %1266 = vmatpush1.msra.mxu0 0.0
    %1267 = vmatprep.subr.mxu0 0.0
    %1268 = vmatpush1.msra.mxu0 0.0
    %1269 = vmatprep.subr.mxu0 0.0
    %1270 = vmatpush1.msra.mxu0 0.0
    %1271 = vmatprep.subr.mxu0 0.0
    %1272 = vmatpush1.msra.mxu0 0.0
    %1273 = vmatprep.subr.mxu0 0.0
    %1274 = vmatpush1.msra.mxu0 0.0
    %1275 = vmatprep.subr.mxu0 0.0
    %1276 = vmatpush1.msra.mxu0 0.0
    %1277 = vmatprep.subr.mxu0 0.0
    %1278 = vmatpush1.msra.mxu0 0.0
    %1279 = vmatprep.subr.mxu0 0.0
    %1280 = vmatpush1.msra.mxu0 0.0
    %1281 = vmatprep.subr.mxu0 0.0
    %1282 = vmatpush1.msra.mxu0 0.0
    %1283 = vmatprep.subr.mxu0 0.0
    %1284 = vmatpush1.msra.mxu0 0.0
    %1285 = vmatprep.subr.mxu0 0.0
    %1286 = vmatpush1.msra.mxu0 0.0
    %1287 = vmatprep.subr.mxu0 0.0
    %1288 = vmatpush1.msra.mxu0 0.0
    %1289 = vmatprep.subr.mxu0 0.0
    %1290 = vmatpush1.msra.mxu0 0.0
    %1291 = vmatprep.subr.mxu0 0.0
    %1292 = vmatpush1.msra.mxu0 0.0
    %1293 = vmatprep.subr.mxu0 0.0
    %1294 = vmatpush1.msra.mxu0 0.0
    %1295 = vmatprep.subr.mxu0 0.0
    %1296 = vmatpush1.msra.mxu0 0.0
    %1297 = vmatprep.subr.mxu0 0.0
    %1298 = vmatpush1.msra.mxu0 0.0
    %1299 = vmatprep.subr.mxu0 0.0
    %1300 = vmatpush1.msra.mxu0 0.0
    %1301 = vmatprep.subr.mxu0 0.0
    %1302 = vmatpush1.msra.mxu0 0.0
    %1303 = vmatprep.subr.mxu0 0.0
    %1304 = vmatpush1.msra.mxu0 0.0
    %1305 = vmatprep.mubr.f32.mxu0 0.0
    %1306 = vmatmul.mubr.f32.gmra.mrb[0].mxu0 %v1168
    %v1307 = vpop.f32.mrb[0].mxu0
    %v1308 = vadd.f32 0.0, %v1307
    %v1309 = vpop.f32.mrb[0].mxu0
    %1310 = vdwg.mxu0
    %v1311 = vadd.f32 %v1135, %v1308
    %v1312 = vadd.f32 %v1311, %v101
    %v1313 = vadd.f32 %v1137, %v1239
    %v1314 = vadd.f32 %v1313, %v94
    %v1315 = vadd.f32 %v1314, %v1237
    %v1316 = vxor.u32 %v1315, 2147483648
    %v1317 = vmul.f32 %v1316, 1.442695
    %v1318 = vpow.pop %v1317
    %v1319 = vadd.f32 %v1318, 1.0
    %v1320 = vrcp.pop %v1319
    %v1321 = vmul.f32 1.0, %v1320
    %v1322 = vadd.f32 %v1237, %v354
    %1324 = vrot.lane.b32.xlu0 %v1322, 64
    %v1325 = vpop.permute.xlu0 %1324
    %v1327 = vmul.f32 %v1321, %v1325
    %1329 = vrot.lane.b32.xlu0 %v1327, 64
    %v1330 = vpop.permute.xlu0 %1329
    %v1332 = vadd.f32 %v1314, %v1330
    %v1333 = vtanh.pop %v1332
    %v1334 = vsub.f32 1.0, %v1321
    %1336 = vrot.lane.b32.xlu0 %v1333, 96
    %v1337 = vpop.permute.xlu0 %1336
    %v1339 = vmul.f32 %v1334, %v1337
    %v1340 = vmul.f32 %v1321, %v1164
    %v1341 = vadd.f32 %v1339, %v1340
    %1343 = vrot.lane.b32.xlu0 %v1341, 96
    %v1344 = vpop.permute.xlu0 %1343
    %v1345 = vsel %vm273, %v1344, 0
    %1347 = vmatprep.subr.mxu0 %v70
    %1348 = vmatpush1.msra.mxu0 %v69
    %1349 = vmatprep.subr.mxu0 %v73
    %1350 = vmatpush1.msra.mxu0 %v72
    %1351 = vmatprep.subr.mxu0 %v76
    %1352 = vmatpush1.msra.mxu0 %v75
    %1353 = vmatprep.subr.mxu0 %v79
    %1354 = vmatpush1.msra.mxu0 %v78
    %1355 = vmatprep.subr.mxu0 0.0
    %1356 = vmatpush1.msra.mxu0 0.0
    %1357 = vmatprep.subr.mxu0 0.0
    %1358 = vmatpush1.msra.mxu0 0.0
    %1359 = vmatprep.subr.mxu0 0.0
    %1360 = vmatpush1.msra.mxu0 0.0
    %1361 = vmatprep.subr.mxu0 0.0
    %1362 = vmatpush1.msra.mxu0 0.0
    %1363 = vmatprep.subr.mxu0 0.0
    %1364 = vmatpush1.msra.mxu0 0.0
    %1365 = vmatprep.subr.mxu0 0.0
    %1366 = vmatpush1.msra.mxu0 0.0
    %1367 = vmatprep.subr.mxu0 0.0
    %1368 = vmatpush1.msra.mxu0 0.0
    %1369 = vmatprep.subr.mxu0 0.0
    %1370 = vmatpush1.msra.mxu0 0.0
    %1371 = vmatprep.subr.mxu0 0.0
    %1372 = vmatpush1.msra.mxu0 0.0
    %1373 = vmatprep.subr.mxu0 0.0
    %1374 = vmatpush1.msra.mxu0 0.0
    %1375 = vmatprep.subr.mxu0 0.0
    %1376 = vmatpush1.msra.mxu0 0.0
    %1377 = vmatprep.subr.mxu0 0.0
    %1378 = vmatpush1.msra.mxu0 0.0
    %1379 = vmatprep.subr.mxu0 0.0
    %1380 = vmatpush1.msra.mxu0 0.0
    %1381 = vmatprep.subr.mxu0 0.0
    %1382 = vmatpush1.msra.mxu0 0.0
    %1383 = vmatprep.subr.mxu0 0.0
    %1384 = vmatpush1.msra.mxu0 0.0
    %1385 = vmatprep.subr.mxu0 0.0
    %1386 = vmatpush1.msra.mxu0 0.0
    %1387 = vmatprep.subr.mxu0 0.0
    %1388 = vmatpush1.msra.mxu0 0.0
    %1389 = vmatprep.subr.mxu0 0.0
    %1390 = vmatpush1.msra.mxu0 0.0
    %1391 = vmatprep.subr.mxu0 0.0
    %1392 = vmatpush1.msra.mxu0 0.0
    %1393 = vmatprep.subr.mxu0 0.0
    %1394 = vmatpush1.msra.mxu0 0.0
    %1395 = vmatprep.subr.mxu0 0.0
    %1396 = vmatpush1.msra.mxu0 0.0
    %1397 = vmatprep.subr.mxu0 0.0
    %1398 = vmatpush1.msra.mxu0 0.0
    %1399 = vmatprep.subr.mxu0 0.0
    %1400 = vmatpush1.msra.mxu0 0.0
    %1401 = vmatprep.subr.mxu0 0.0
    %1402 = vmatpush1.msra.mxu0 0.0
    %1403 = vmatprep.subr.mxu0 0.0
    %1404 = vmatpush1.msra.mxu0 0.0
    %1405 = vmatprep.subr.mxu0 0.0
    %1406 = vmatpush1.msra.mxu0 0.0
    %1407 = vmatprep.subr.mxu0 0.0
    %1408 = vmatpush1.msra.mxu0 0.0
    %1409 = vmatprep.subr.mxu0 0.0
    %1410 = vmatpush1.msra.mxu0 0.0
    %1411 = vmatprep.mubr.f32.mxu0 0.0
    %1412 = vmatmul.mubr.f32.gmra.mrb[0].mxu0 %v1345
    %v1413 = vpop.f32.mrb[0].mxu0
    %v1414 = vadd.f32 0.0, %v1413
    %v1415 = vpop.f32.mrb[0].mxu0
    %v1416 = vadd.f32 0.0, %v1415
    %1417 = vdwg.mxu0
    %1418 = vmatprep.subr.mxu0 0.0
    %1419 = vmatpush1.msra.mxu0 %v71
    %1420 = vmatprep.subr.mxu0 0.0
    %1421 = vmatpush1.msra.mxu0 %v74
    %1422 = vmatprep.subr.mxu0 0.0
    %1423 = vmatpush1.msra.mxu0 %v77
    %1424 = vmatprep.subr.mxu0 0.0
    %1425 = vmatpush1.msra.mxu0 %v80
    %1426 = vmatprep.subr.mxu0 0.0
    %1427 = vmatpush1.msra.mxu0 0.0
    %1428 = vmatprep.subr.mxu0 0.0
    %1429 = vmatpush1.msra.mxu0 0.0
    %1430 = vmatprep.subr.mxu0 0.0
    %1431 = vmatpush1.msra.mxu0 0.0
    %1432 = vmatprep.subr.mxu0 0.0
    %1433 = vmatpush1.msra.mxu0 0.0
    %1434 = vmatprep.subr.mxu0 0.0
    %1435 = vmatpush1.msra.mxu0 0.0
    %1436 = vmatprep.subr.mxu0 0.0
    %1437 = vmatpush1.msra.mxu0 0.0
    %1438 = vmatprep.subr.mxu0 0.0
    %1439 = vmatpush1.msra.mxu0 0.0
    %1440 = vmatprep.subr.mxu0 0.0
    %1441 = vmatpush1.msra.mxu0 0.0
    %1442 = vmatprep.subr.mxu0 0.0
    %1443 = vmatpush1.msra.mxu0 0.0
    %1444 = vmatprep.subr.mxu0 0.0
    %1445 = vmatpush1.msra.mxu0 0.0
    %1446 = vmatprep.subr.mxu0 0.0
    %1447 = vmatpush1.msra.mxu0 0.0
    %1448 = vmatprep.subr.mxu0 0.0
    %1449 = vmatpush1.msra.mxu0 0.0
    %1450 = vmatprep.subr.mxu0 0.0
    %1451 = vmatpush1.msra.mxu0 0.0
    %1452 = vmatprep.subr.mxu0 0.0
    %1453 = vmatpush1.msra.mxu0 0.0
    %1454 = vmatprep.subr.mxu0 0.0
    %1455 = vmatpush1.msra.mxu0 0.0
    %1456 = vmatprep.subr.mxu0 0.0
    %1457 = vmatpush1.msra.mxu0 0.0
    %1458 = vmatprep.subr.mxu0 0.0
    %1459 = vmatpush1.msra.mxu0 0.0
    %1460 = vmatprep.subr.mxu0 0.0
    %1461 = vmatpush1.msra.mxu0 0.0
    %1462 = vmatprep.subr.mxu0 0.0
    %1463 = vmatpush1.msra.mxu0 0.0
    %1464 = vmatprep.subr.mxu0 0.0
    %1465 = vmatpush1.msra.mxu0 0.0
    %1466 = vmatprep.subr.mxu0 0.0
    %1467 = vmatpush1.msra.mxu0 0.0
    %1468 = vmatprep.subr.mxu0 0.0
    %1469 = vmatpush1.msra.mxu0 0.0
    %1470 = vmatprep.subr.mxu0 0.0
    %1471 = vmatpush1.msra.mxu0 0.0
    %1472 = vmatprep.subr.mxu0 0.0
    %1473 = vmatpush1.msra.mxu0 0.0
    %1474 = vmatprep.subr.mxu0 0.0
    %1475 = vmatpush1.msra.mxu0 0.0
    %1476 = vmatprep.subr.mxu0 0.0
    %1477 = vmatpush1.msra.mxu0 0.0
    %1478 = vmatprep.subr.mxu0 0.0
    %1479 = vmatpush1.msra.mxu0 0.0
    %1480 = vmatprep.subr.mxu0 0.0
    %1481 = vmatpush1.msra.mxu0 0.0
    %1482 = vmatprep.mubr.f32.mxu0 0.0
    %1483 = vmatmul.mubr.f32.gmra.mrb[0].mxu0 %v1345
    %v1484 = vpop.f32.mrb[0].mxu0
    %v1485 = vadd.f32 0.0, %v1484
    %v1486 = vpop.f32.mrb[0].mxu0
    %1487 = vdwg.mxu0
    %v1488 = vadd.f32 %v1312, %v1485
    %v1489 = vadd.f32 %v1488, %v101
    %v1490 = vadd.f32 %v1314, %v1416
    %v1491 = vadd.f32 %v1490, %v94
    %v1492 = vadd.f32 %v1491, %v1414
    %v1493 = vxor.u32 %v1492, 2147483648
    %v1494 = vmul.f32 %v1493, 1.442695
    %v1495 = vpow.pop %v1494
    %v1496 = vadd.f32 %v1495, 1.0
    %v1497 = vrcp.pop %v1496
    %v1498 = vmul.f32 1.0, %v1497
    %v1499 = vadd.f32 %v1414, %v354
    %1501 = vrot.lane.b32.xlu0 %v1499, 64
    %v1502 = vpop.permute.xlu0 %1501
    %v1504 = vmul.f32 %v1498, %v1502
    %1506 = vrot.lane.b32.xlu0 %v1504, 64
    %v1507 = vpop.permute.xlu0 %1506
    %v1509 = vadd.f32 %v1491, %v1507
    %v1510 = vtanh.pop %v1509
    %v1511 = vsub.f32 1.0, %v1498
    %1513 = vrot.lane.b32.xlu0 %v1510, 96
    %v1514 = vpop.permute.xlu0 %1513
    %v1516 = vmul.f32 %v1511, %v1514
    %v1517 = vmul.f32 %v1498, %v1341
    %v1518 = vadd.f32 %v1516, %v1517
    %1520 = vrot.lane.b32.xlu0 %v1518, 96
    %v1521 = vpop.permute.xlu0 %1520
    %v1522 = vsel %vm273, %v1521, 0
    %1524 = vmatprep.subr.mxu0 %v70
    %1525 = vmatpush1.msra.mxu0 %v69
    %1526 = vmatprep.subr.mxu0 %v73
    %1527 = vmatpush1.msra.mxu0 %v72
    %1528 = vmatprep.subr.mxu0 %v76
    %1529 = vmatpush1.msra.mxu0 %v75
    %1530 = vmatprep.subr.mxu0 %v79
    %1531 = vmatpush1.msra.mxu0 %v78
    %1532 = vmatprep.subr.mxu0 0.0
    %1533 = vmatpush1.msra.mxu0 0.0
    %1534 = vmatprep.subr.mxu0 0.0
    %1535 = vmatpush1.msra.mxu0 0.0
    %1536 = vmatprep.subr.mxu0 0.0
    %1537 = vmatpush1.msra.mxu0 0.0
    %1538 = vmatprep.subr.mxu0 0.0
    %1539 = vmatpush1.msra.mxu0 0.0
    %1540 = vmatprep.subr.mxu0 0.0
    %1541 = vmatpush1.msra.mxu0 0.0
    %1542 = vmatprep.subr.mxu0 0.0
    %1543 = vmatpush1.msra.mxu0 0.0
    %1544 = vmatprep.subr.mxu0 0.0
    %1545 = vmatpush1.msra.mxu0 0.0
    %1546 = vmatprep.subr.mxu0 0.0
    %1547 = vmatpush1.msra.mxu0 0.0
    %1548 = vmatprep.subr.mxu0 0.0
    %1549 = vmatpush1.msra.mxu0 0.0
    %1550 = vmatprep.subr.mxu0 0.0
    %1551 = vmatpush1.msra.mxu0 0.0
    %1552 = vmatprep.subr.mxu0 0.0
    %1553 = vmatpush1.msra.mxu0 0.0
    %1554 = vmatprep.subr.mxu0 0.0
    %1555 = vmatpush1.msra.mxu0 0.0
    %1556 = vmatprep.subr.mxu0 0.0
    %1557 = vmatpush1.msra.mxu0 0.0
    %1558 = vmatprep.subr.mxu0 0.0
    %1559 = vmatpush1.msra.mxu0 0.0
    %1560 = vmatprep.subr.mxu0 0.0
    %1561 = vmatpush1.msra.mxu0 0.0
    %1562 = vmatprep.subr.mxu0 0.0
    %1563 = vmatpush1.msra.mxu0 0.0
    %1564 = vmatprep.subr.mxu0 0.0
    %1565 = vmatpush1.msra.mxu0 0.0
    %1566 = vmatprep.subr.mxu0 0.0
    %1567 = vmatpush1.msra.mxu0 0.0
    %1568 = vmatprep.subr.mxu0 0.0
    %1569 = vmatpush1.msra.mxu0 0.0
    %1570 = vmatprep.subr.mxu0 0.0
    %1571 = vmatpush1.msra.mxu0 0.0
    %1572 = vmatprep.subr.mxu0 0.0
    %1573 = vmatpush1.msra.mxu0 0.0
    %1574 = vmatprep.subr.mxu0 0.0
    %1575 = vmatpush1.msra.mxu0 0.0
    %1576 = vmatprep.subr.mxu0 0.0
    %1577 = vmatpush1.msra.mxu0 0.0
    %1578 = vmatprep.subr.mxu0 0.0
    %1579 = vmatpush1.msra.mxu0 0.0
    %1580 = vmatprep.subr.mxu0 0.0
    %1581 = vmatpush1.msra.mxu0 0.0
    %1582 = vmatprep.subr.mxu0 0.0
    %1583 = vmatpush1.msra.mxu0 0.0
    %1584 = vmatprep.subr.mxu0 0.0
    %1585 = vmatpush1.msra.mxu0 0.0
    %1586 = vmatprep.subr.mxu0 0.0
    %1587 = vmatpush1.msra.mxu0 0.0
    %1588 = vmatprep.mubr.f32.mxu0 0.0
    %1589 = vmatmul.mubr.f32.gmra.mrb[0].mxu0 %v1522
    %v1590 = vpop.f32.mrb[0].mxu0
    %v1591 = vadd.f32 0.0, %v1590
    %v1592 = vpop.f32.mrb[0].mxu0
    %v1593 = vadd.f32 0.0, %v1592
    %1594 = vdwg.mxu0
    %1595 = vmatprep.subr.mxu0 0.0
    %1596 = vmatpush1.msra.mxu0 %v71
    %1597 = vmatprep.subr.mxu0 0.0
    %1598 = vmatpush1.msra.mxu0 %v74
    %1599 = vmatprep.subr.mxu0 0.0
    %1600 = vmatpush1.msra.mxu0 %v77
    %1601 = vmatprep.subr.mxu0 0.0
    %1602 = vmatpush1.msra.mxu0 %v80
    %1603 = vmatprep.subr.mxu0 0.0
    %1604 = vmatpush1.msra.mxu0 0.0
    %1605 = vmatprep.subr.mxu0 0.0
    %1606 = vmatpush1.msra.mxu0 0.0
    %1607 = vmatprep.subr.mxu0 0.0
    %1608 = vmatpush1.msra.mxu0 0.0
    %1609 = vmatprep.subr.mxu0 0.0
    %1610 = vmatpush1.msra.mxu0 0.0
    %1611 = vmatprep.subr.mxu0 0.0
    %1612 = vmatpush1.msra.mxu0 0.0
    %1613 = vmatprep.subr.mxu0 0.0
    %1614 = vmatpush1.msra.mxu0 0.0
    %1615 = vmatprep.subr.mxu0 0.0
    %1616 = vmatpush1.msra.mxu0 0.0
    %1617 = vmatprep.subr.mxu0 0.0
    %1618 = vmatpush1.msra.mxu0 0.0
    %1619 = vmatprep.subr.mxu0 0.0
    %1620 = vmatpush1.msra.mxu0 0.0
    %1621 = vmatprep.subr.mxu0 0.0
    %1622 = vmatpush1.msra.mxu0 0.0
    %1623 = vmatprep.subr.mxu0 0.0
    %1624 = vmatpush1.msra.mxu0 0.0
    %1625 = vmatprep.subr.mxu0 0.0
    %1626 = vmatpush1.msra.mxu0 0.0
    %1627 = vmatprep.subr.mxu0 0.0
    %1628 = vmatpush1.msra.mxu0 0.0
    %1629 = vmatprep.subr.mxu0 0.0
    %1630 = vmatpush1.msra.mxu0 0.0
    %1631 = vmatprep.subr.mxu0 0.0
    %1632 = vmatpush1.msra.mxu0 0.0
    %1633 = vmatprep.subr.mxu0 0.0
    %1634 = vmatpush1.msra.mxu0 0.0
    %1635 = vmatprep.subr.mxu0 0.0
    %1636 = vmatpush1.msra.mxu0 0.0
    %1637 = vmatprep.subr.mxu0 0.0
    %1638 = vmatpush1.msra.mxu0 0.0
    %1639 = vmatprep.subr.mxu0 0.0
    %1640 = vmatpush1.msra.mxu0 0.0
    %1641 = vmatprep.subr.mxu0 0.0
    %1642 = vmatpush1.msra.mxu0 0.0
    %1643 = vmatprep.subr.mxu0 0.0
    %1644 = vmatpush1.msra.mxu0 0.0
    %1645 = vmatprep.subr.mxu0 0.0
    %1646 = vmatpush1.msra.mxu0 0.0
    %1647 = vmatprep.subr.mxu0 0.0
    %1648 = vmatpush1.msra.mxu0 0.0
    %1649 = vmatprep.subr.mxu0 0.0
    %1650 = vmatpush1.msra.mxu0 0.0
    %1651 = vmatprep.subr.mxu0 0.0
    %1652 = vmatpush1.msra.mxu0 0.0
    %1653 = vmatprep.subr.mxu0 0.0
    %1654 = vmatpush1.msra.mxu0 0.0
    %1655 = vmatprep.subr.mxu0 0.0
    %1656 = vmatpush1.msra.mxu0 0.0
    %1657 = vmatprep.subr.mxu0 0.0
    %1658 = vmatpush1.msra.mxu0 0.0
    %1659 = vmatprep.mubr.f32.mxu0 0.0
    %1660 = vmatmul.mubr.f32.gmra.mrb[0].mxu0 %v1522
    %v1661 = vpop.f32.mrb[0].mxu0
    %v1662 = vadd.f32 0.0, %v1661
    %v1663 = vpop.f32.mrb[0].mxu0
    %1664 = vdwg.mxu0
    %v1665 = vadd.f32 %v1489, %v1662
    %v1666 = vadd.f32 %v1665, %v101
    %v1667 = vadd.f32 %v1491, %v1593
    %v1668 = vadd.f32 %v1667, %v94
    %v1669 = vadd.f32 %v1668, %v1591
    %v1670 = vxor.u32 %v1669, 2147483648
    %v1671 = vmul.f32 %v1670, 1.442695
    %v1672 = vpow.pop %v1671
    %v1673 = vadd.f32 %v1672, 1.0
    %v1674 = vrcp.pop %v1673
    %v1675 = vmul.f32 1.0, %v1674
    %v1676 = vadd.f32 %v1591, %v354
    %1678 = vrot.lane.b32.xlu0 %v1676, 64
    %v1679 = vpop.permute.xlu0 %1678
    %v1681 = vmul.f32 %v1675, %v1679
    %1683 = vrot.lane.b32.xlu0 %v1681, 64
    %v1684 = vpop.permute.xlu0 %1683
    %v1686 = vadd.f32 %v1668, %v1684
    %v1687 = vtanh.pop %v1686
    %v1688 = vsub.f32 1.0, %v1675
    %1690 = vrot.lane.b32.xlu0 %v1687, 96
    %v1691 = vpop.permute.xlu0 %1690
    %v1693 = vmul.f32 %v1688, %v1691
    %v1694 = vmul.f32 %v1675, %v1518
    %v1695 = vadd.f32 %v1693, %v1694
    %1697 = vrot.lane.b32.xlu0 %v1695, 96
    %v1698 = vpop.permute.xlu0 %1697
    %v1699 = vsel %vm273, %v1698, 0
    %1701 = vmatprep.subr.mxu0 %v70
    %1702 = vmatpush1.msra.mxu0 %v69
    %1703 = vmatprep.subr.mxu0 %v73
    %1704 = vmatpush1.msra.mxu0 %v72
    %1705 = vmatprep.subr.mxu0 %v76
    %1706 = vmatpush1.msra.mxu0 %v75
    %1707 = vmatprep.subr.mxu0 %v79
    %1708 = vmatpush1.msra.mxu0 %v78
    %1709 = vmatprep.subr.mxu0 0.0
    %1710 = vmatpush1.msra.mxu0 0.0
    %1711 = vmatprep.subr.mxu0 0.0
    %1712 = vmatpush1.msra.mxu0 0.0
    %1713 = vmatprep.subr.mxu0 0.0
    %1714 = vmatpush1.msra.mxu0 0.0
    %1715 = vmatprep.subr.mxu0 0.0
    %1716 = vmatpush1.msra.mxu0 0.0
    %1717 = vmatprep.subr.mxu0 0.0
    %1718 = vmatpush1.msra.mxu0 0.0
    %1719 = vmatprep.subr.mxu0 0.0
    %1720 = vmatpush1.msra.mxu0 0.0
    %1721 = vmatprep.subr.mxu0 0.0
    %1722 = vmatpush1.msra.mxu0 0.0
    %1723 = vmatprep.subr.mxu0 0.0
    %1724 = vmatpush1.msra.mxu0 0.0
    %1725 = vmatprep.subr.mxu0 0.0
    %1726 = vmatpush1.msra.mxu0 0.0
    %1727 = vmatprep.subr.mxu0 0.0
    %1728 = vmatpush1.msra.mxu0 0.0
    %1729 = vmatprep.subr.mxu0 0.0
    %1730 = vmatpush1.msra.mxu0 0.0
    %1731 = vmatprep.subr.mxu0 0.0
    %1732 = vmatpush1.msra.mxu0 0.0
    %1733 = vmatprep.subr.mxu0 0.0
    %1734 = vmatpush1.msra.mxu0 0.0
    %1735 = vmatprep.subr.mxu0 0.0
    %1736 = vmatpush1.msra.mxu0 0.0
    %1737 = vmatprep.subr.mxu0 0.0
    %1738 = vmatpush1.msra.mxu0 0.0
    %1739 = vmatprep.subr.mxu0 0.0
    %1740 = vmatpush1.msra.mxu0 0.0
    %1741 = vmatprep.subr.mxu0 0.0
    %1742 = vmatpush1.msra.mxu0 0.0
    %1743 = vmatprep.subr.mxu0 0.0
    %1744 = vmatpush1.msra.mxu0 0.0
    %1745 = vmatprep.subr.mxu0 0.0
    %1746 = vmatpush1.msra.mxu0 0.0
    %1747 = vmatprep.subr.mxu0 0.0
    %1748 = vmatpush1.msra.mxu0 0.0
    %1749 = vmatprep.subr.mxu0 0.0
    %1750 = vmatpush1.msra.mxu0 0.0
    %1751 = vmatprep.subr.mxu0 0.0
    %1752 = vmatpush1.msra.mxu0 0.0
    %1753 = vmatprep.subr.mxu0 0.0
    %1754 = vmatpush1.msra.mxu0 0.0
    %1755 = vmatprep.subr.mxu0 0.0
    %1756 = vmatpush1.msra.mxu0 0.0
    %1757 = vmatprep.subr.mxu0 0.0
    %1758 = vmatpush1.msra.mxu0 0.0
    %1759 = vmatprep.subr.mxu0 0.0
    %1760 = vmatpush1.msra.mxu0 0.0
    %1761 = vmatprep.subr.mxu0 0.0
    %1762 = vmatpush1.msra.mxu0 0.0
    %1763 = vmatprep.subr.mxu0 0.0
    %1764 = vmatpush1.msra.mxu0 0.0
    %1765 = vmatprep.mubr.f32.mxu0 0.0
    %1766 = vmatmul.mubr.f32.gmra.mrb[0].mxu0 %v1699
    %v1767 = vpop.f32.mrb[0].mxu0
    %v1768 = vadd.f32 0.0, %v1767
    %v1769 = vpop.f32.mrb[0].mxu0
    %v1770 = vadd.f32 0.0, %v1769
    %1771 = vdwg.mxu0
    %1772 = vmatprep.subr.mxu0 0.0
    %1773 = vmatpush1.msra.mxu0 %v71
    %1774 = vmatprep.subr.mxu0 0.0
    %1775 = vmatpush1.msra.mxu0 %v74
    %1776 = vmatprep.subr.mxu0 0.0
    %1777 = vmatpush1.msra.mxu0 %v77
    %1778 = vmatprep.subr.mxu0 0.0
    %1779 = vmatpush1.msra.mxu0 %v80
    %1780 = vmatprep.subr.mxu0 0.0
    %1781 = vmatpush1.msra.mxu0 0.0
    %1782 = vmatprep.subr.mxu0 0.0
    %1783 = vmatpush1.msra.mxu0 0.0
    %1784 = vmatprep.subr.mxu0 0.0
    %1785 = vmatpush1.msra.mxu0 0.0
    %1786 = vmatprep.subr.mxu0 0.0
    %1787 = vmatpush1.msra.mxu0 0.0
    %1788 = vmatprep.subr.mxu0 0.0
    %1789 = vmatpush1.msra.mxu0 0.0
    %1790 = vmatprep.subr.mxu0 0.0
    %1791 = vmatpush1.msra.mxu0 0.0
    %1792 = vmatprep.subr.mxu0 0.0
    %1793 = vmatpush1.msra.mxu0 0.0
    %1794 = vmatprep.subr.mxu0 0.0
    %1795 = vmatpush1.msra.mxu0 0.0
    %1796 = vmatprep.subr.mxu0 0.0
    %1797 = vmatpush1.msra.mxu0 0.0
    %1798 = vmatprep.subr.mxu0 0.0
    %1799 = vmatpush1.msra.mxu0 0.0
    %1800 = vmatprep.subr.mxu0 0.0
    %1801 = vmatpush1.msra.mxu0 0.0
    %1802 = vmatprep.subr.mxu0 0.0
    %1803 = vmatpush1.msra.mxu0 0.0
    %1804 = vmatprep.subr.mxu0 0.0
    %1805 = vmatpush1.msra.mxu0 0.0
    %1806 = vmatprep.subr.mxu0 0.0
    %1807 = vmatpush1.msra.mxu0 0.0
    %1808 = vmatprep.subr.mxu0 0.0
    %1809 = vmatpush1.msra.mxu0 0.0
    %1810 = vmatprep.subr.mxu0 0.0
    %1811 = vmatpush1.msra.mxu0 0.0
    %1812 = vmatprep.subr.mxu0 0.0
    %1813 = vmatpush1.msra.mxu0 0.0
    %1814 = vmatprep.subr.mxu0 0.0
    %1815 = vmatpush1.msra.mxu0 0.0
    %1816 = vmatprep.subr.mxu0 0.0
    %1817 = vmatpush1.msra.mxu0 0.0
    %1818 = vmatprep.subr.mxu0 0.0
    %1819 = vmatpush1.msra.mxu0 0.0
    %1820 = vmatprep.subr.mxu0 0.0
    %1821 = vmatpush1.msra.mxu0 0.0
    %1822 = vmatprep.subr.mxu0 0.0
    %1823 = vmatpush1.msra.mxu0 0.0
    %1824 = vmatprep.subr.mxu0 0.0
    %1825 = vmatpush1.msra.mxu0 0.0
    %1826 = vmatprep.subr.mxu0 0.0
    %1827 = vmatpush1.msra.mxu0 0.0
    %1828 = vmatprep.subr.mxu0 0.0
    %1829 = vmatpush1.msra.mxu0 0.0
    %1830 = vmatprep.subr.mxu0 0.0
    %1831 = vmatpush1.msra.mxu0 0.0
    %1832 = vmatprep.subr.mxu0 0.0
    %1833 = vmatpush1.msra.mxu0 0.0
    %1834 = vmatprep.subr.mxu0 0.0
    %1835 = vmatpush1.msra.mxu0 0.0
    %1836 = vmatprep.mubr.f32.mxu0 0.0
    %1837 = vmatmul.mubr.f32.gmra.mrb[0].mxu0 %v1699
    %v1838 = vpop.f32.mrb[0].mxu0
    %v1839 = vadd.f32 0.0, %v1838
    %v1840 = vpop.f32.mrb[0].mxu0
    %1841 = vdwg.mxu0
    %v1842 = vadd.f32 %v1666, %v1839
    %v1843 = vadd.f32 %v1842, %v101
    %v1844 = vadd.f32 %v1668, %v1770
    %v1845 = vadd.f32 %v1844, %v94
    %v1846 = vadd.f32 %v1845, %v1768
    %v1847 = vxor.u32 %v1846, 2147483648
    %v1848 = vmul.f32 %v1847, 1.442695
    %v1849 = vpow.pop %v1848
    %v1850 = vadd.f32 %v1849, 1.0
    %v1851 = vrcp.pop %v1850
    %v1852 = vmul.f32 1.0, %v1851
    %v1853 = vadd.f32 %v1768, %v354
    %1855 = vrot.lane.b32.xlu0 %v1853, 64
    %v1856 = vpop.permute.xlu0 %1855
    %v1858 = vmul.f32 %v1852, %v1856
    %1860 = vrot.lane.b32.xlu0 %v1858, 64
    %v1861 = vpop.permute.xlu0 %1860
    %v1863 = vadd.f32 %v1845, %v1861
    %v1864 = vtanh.pop %v1863
    %v1865 = vsub.f32 1.0, %v1852
    %1867 = vrot.lane.b32.xlu0 %v1864, 96
    %v1868 = vpop.permute.xlu0 %1867
    %v1870 = vmul.f32 %v1865, %v1868
    %v1871 = vmul.f32 %v1852, %v1695
    %v1872 = vadd.f32 %v1870, %v1871
    %1874 = vrot.lane.b32.xlu0 %v1872, 96
    %v1875 = vpop.permute.xlu0 %1874
    %v1876 = vsel %vm273, %v1875, 0
    %1878 = vmatprep.subr.mxu0 %v70
    %1879 = vmatpush1.msra.mxu0 %v69
    %1880 = vmatprep.subr.mxu0 %v73
    %1881 = vmatpush1.msra.mxu0 %v72
    %1882 = vmatprep.subr.mxu0 %v76
    %1883 = vmatpush1.msra.mxu0 %v75
    %1884 = vmatprep.subr.mxu0 %v79
    %1885 = vmatpush1.msra.mxu0 %v78
    %1886 = vmatprep.subr.mxu0 0.0
    %1887 = vmatpush1.msra.mxu0 0.0
    %1888 = vmatprep.subr.mxu0 0.0
    %1889 = vmatpush1.msra.mxu0 0.0
    %1890 = vmatprep.subr.mxu0 0.0
    %1891 = vmatpush1.msra.mxu0 0.0
    %1892 = vmatprep.subr.mxu0 0.0
    %1893 = vmatpush1.msra.mxu0 0.0
    %1894 = vmatprep.subr.mxu0 0.0
    %1895 = vmatpush1.msra.mxu0 0.0
    %1896 = vmatprep.subr.mxu0 0.0
    %1897 = vmatpush1.msra.mxu0 0.0
    %1898 = vmatprep.subr.mxu0 0.0
    %1899 = vmatpush1.msra.mxu0 0.0
    %1900 = vmatprep.subr.mxu0 0.0
    %1901 = vmatpush1.msra.mxu0 0.0
    %1902 = vmatprep.subr.mxu0 0.0
    %1903 = vmatpush1.msra.mxu0 0.0
    %1904 = vmatprep.subr.mxu0 0.0
    %1905 = vmatpush1.msra.mxu0 0.0
    %1906 = vmatprep.subr.mxu0 0.0
    %1907 = vmatpush1.msra.mxu0 0.0
    %1908 = vmatprep.subr.mxu0 0.0
    %1909 = vmatpush1.msra.mxu0 0.0
    %1910 = vmatprep.subr.mxu0 0.0
    %1911 = vmatpush1.msra.mxu0 0.0
    %1912 = vmatprep.subr.mxu0 0.0
    %1913 = vmatpush1.msra.mxu0 0.0
    %1914 = vmatprep.subr.mxu0 0.0
    %1915 = vmatpush1.msra.mxu0 0.0
    %1916 = vmatprep.subr.mxu0 0.0
    %1917 = vmatpush1.msra.mxu0 0.0
    %1918 = vmatprep.subr.mxu0 0.0
    %1919 = vmatpush1.msra.mxu0 0.0
    %1920 = vmatprep.subr.mxu0 0.0
    %1921 = vmatpush1.msra.mxu0 0.0
    %1922 = vmatprep.subr.mxu0 0.0
    %1923 = vmatpush1.msra.mxu0 0.0
    %1924 = vmatprep.subr.mxu0 0.0
    %1925 = vmatpush1.msra.mxu0 0.0
    %1926 = vmatprep.subr.mxu0 0.0
    %1927 = vmatpush1.msra.mxu0 0.0
    %1928 = vmatprep.subr.mxu0 0.0
    %1929 = vmatpush1.msra.mxu0 0.0
    %1930 = vmatprep.subr.mxu0 0.0
    %1931 = vmatpush1.msra.mxu0 0.0
    %1932 = vmatprep.subr.mxu0 0.0
    %1933 = vmatpush1.msra.mxu0 0.0
    %1934 = vmatprep.subr.mxu0 0.0
    %1935 = vmatpush1.msra.mxu0 0.0
    %1936 = vmatprep.subr.mxu0 0.0
    %1937 = vmatpush1.msra.mxu0 0.0
    %1938 = vmatprep.subr.mxu0 0.0
    %1939 = vmatpush1.msra.mxu0 0.0
    %1940 = vmatprep.subr.mxu0 0.0
    %1941 = vmatpush1.msra.mxu0 0.0
    %1942 = vmatprep.mubr.f32.mxu0 0.0
    %1943 = vmatmul.mubr.f32.gmra.mrb[0].mxu0 %v1876
    %v1944 = vpop.f32.mrb[0].mxu0
    %v1945 = vadd.f32 0.0, %v1944
    %v1946 = vpop.f32.mrb[0].mxu0
    %v1947 = vadd.f32 0.0, %v1946
    %1948 = vdwg.mxu0
    %1949 = vmatprep.subr.mxu0 0.0
    %1950 = vmatpush1.msra.mxu0 %v71
    %1951 = vmatprep.subr.mxu0 0.0
    %1952 = vmatpush1.msra.mxu0 %v74
    %1953 = vmatprep.subr.mxu0 0.0
    %1954 = vmatpush1.msra.mxu0 %v77
    %1955 = vmatprep.subr.mxu0 0.0
    %1956 = vmatpush1.msra.mxu0 %v80
    %1957 = vmatprep.subr.mxu0 0.0
    %1958 = vmatpush1.msra.mxu0 0.0
    %1959 = vmatprep.subr.mxu0 0.0
    %1960 = vmatpush1.msra.mxu0 0.0
    %1961 = vmatprep.subr.mxu0 0.0
    %1962 = vmatpush1.msra.mxu0 0.0
    %1963 = vmatprep.subr.mxu0 0.0
    %1964 = vmatpush1.msra.mxu0 0.0
    %1965 = vmatprep.subr.mxu0 0.0
    %1966 = vmatpush1.msra.mxu0 0.0
    %1967 = vmatprep.subr.mxu0 0.0
    %1968 = vmatpush1.msra.mxu0 0.0
    %1969 = vmatprep.subr.mxu0 0.0
    %1970 = vmatpush1.msra.mxu0 0.0
    %1971 = vmatprep.subr.mxu0 0.0
    %1972 = vmatpush1.msra.mxu0 0.0
    %1973 = vmatprep.subr.mxu0 0.0
    %1974 = vmatpush1.msra.mxu0 0.0
    %1975 = vmatprep.subr.mxu0 0.0
    %1976 = vmatpush1.msra.mxu0 0.0
    %1977 = vmatprep.subr.mxu0 0.0
    %1978 = vmatpush1.msra.mxu0 0.0
    %1979 = vmatprep.subr.mxu0 0.0
    %1980 = vmatpush1.msra.mxu0 0.0
    %1981 = vmatprep.subr.mxu0 0.0
    %1982 = vmatpush1.msra.mxu0 0.0
    %1983 = vmatprep.subr.mxu0 0.0
    %1984 = vmatpush1.msra.mxu0 0.0
    %1985 = vmatprep.subr.mxu0 0.0
    %1986 = vmatpush1.msra.mxu0 0.0
    %1987 = vmatprep.subr.mxu0 0.0
    %1988 = vmatpush1.msra.mxu0 0.0
    %1989 = vmatprep.subr.mxu0 0.0
    %1990 = vmatpush1.msra.mxu0 0.0
    %1991 = vmatprep.subr.mxu0 0.0
    %1992 = vmatpush1.msra.mxu0 0.0
    %1993 = vmatprep.subr.mxu0 0.0
    %1994 = vmatpush1.msra.mxu0 0.0
    %1995 = vmatprep.subr.mxu0 0.0
    %1996 = vmatpush1.msra.mxu0 0.0
    %1997 = vmatprep.subr.mxu0 0.0
    %1998 = vmatpush1.msra.mxu0 0.0
    %1999 = vmatprep.subr.mxu0 0.0
    %2000 = vmatpush1.msra.mxu0 0.0
    %2001 = vmatprep.subr.mxu0 0.0
    %2002 = vmatpush1.msra.mxu0 0.0
    %2003 = vmatprep.subr.mxu0 0.0
    %2004 = vmatpush1.msra.mxu0 0.0
    %2005 = vmatprep.subr.mxu0 0.0
    %2006 = vmatpush1.msra.mxu0 0.0
    %2007 = vmatprep.subr.mxu0 0.0
    %2008 = vmatpush1.msra.mxu0 0.0
    %2009 = vmatprep.subr.mxu0 0.0
    %2010 = vmatpush1.msra.mxu0 0.0
    %2011 = vmatprep.subr.mxu0 0.0
    %2012 = vmatpush1.msra.mxu0 0.0
    %2013 = vmatprep.mubr.f32.mxu0 0.0
    %2014 = vmatmul.mubr.f32.gmra.mrb[0].mxu0 %v1876
    %v2015 = vpop.f32.mrb[0].mxu0
    %v2016 = vadd.f32 0.0, %v2015
    %v2017 = vpop.f32.mrb[0].mxu0
    %2018 = vdwg.mxu0
    %v2019 = vadd.f32 %v1843, %v2016
    %v2020 = vadd.f32 %v2019, %v101
    %v2021 = vadd.f32 %v1845, %v1947
    %v2022 = vadd.f32 %v2021, %v94
    %v2023 = vadd.f32 %v2022, %v1945
    %v2024 = vxor.u32 %v2023, 2147483648
    %v2025 = vmul.f32 %v2024, 1.442695
    %v2026 = vpow.pop %v2025
    %v2027 = vadd.f32 %v2026, 1.0
    %v2028 = vrcp.pop %v2027
    %v2029 = vmul.f32 1.0, %v2028
    %v2030 = vadd.f32 %v1945, %v354
    %2032 = vrot.lane.b32.xlu0 %v2030, 64
    %v2033 = vpop.permute.xlu0 %2032
    %v2035 = vmul.f32 %v2029, %v2033
    %2037 = vrot.lane.b32.xlu0 %v2035, 64
    %v2038 = vpop.permute.xlu0 %2037
    %v2040 = vadd.f32 %v2022, %v2038
    %v2041 = vtanh.pop %v2040
    %v2042 = vsub.f32 1.0, %v2029
    %2044 = vrot.lane.b32.xlu0 %v2041, 96
    %v2045 = vpop.permute.xlu0 %2044
    %v2047 = vmul.f32 %v2042, %v2045
    %v2048 = vmul.f32 %v2029, %v1872
    %v2049 = vadd.f32 %v2047, %v2048
    %2051 = vrot.lane.b32.xlu0 %v2049, 96
    %v2052 = vpop.permute.xlu0 %2051
    %v2053 = vsel %vm273, %v2052, 0
    %2055 = vmatprep.subr.mxu0 %v70
    %2056 = vmatpush1.msra.mxu0 %v69
    %2057 = vmatprep.subr.mxu0 %v73
    %2058 = vmatpush1.msra.mxu0 %v72
    %2059 = vmatprep.subr.mxu0 %v76
    %2060 = vmatpush1.msra.mxu0 %v75
    %2061 = vmatprep.subr.mxu0 %v79
    %2062 = vmatpush1.msra.mxu0 %v78
    %2063 = vmatprep.subr.mxu0 0.0
    %2064 = vmatpush1.msra.mxu0 0.0
    %2065 = vmatprep.subr.mxu0 0.0
    %2066 = vmatpush1.msra.mxu0 0.0
    %2067 = vmatprep.subr.mxu0 0.0
    %2068 = vmatpush1.msra.mxu0 0.0
    %2069 = vmatprep.subr.mxu0 0.0
    %2070 = vmatpush1.msra.mxu0 0.0
    %2071 = vmatprep.subr.mxu0 0.0
    %2072 = vmatpush1.msra.mxu0 0.0
    %2073 = vmatprep.subr.mxu0 0.0
    %2074 = vmatpush1.msra.mxu0 0.0
    %2075 = vmatprep.subr.mxu0 0.0
    %2076 = vmatpush1.msra.mxu0 0.0
    %2077 = vmatprep.subr.mxu0 0.0
    %2078 = vmatpush1.msra.mxu0 0.0
    %2079 = vmatprep.subr.mxu0 0.0
    %2080 = vmatpush1.msra.mxu0 0.0
    %2081 = vmatprep.subr.mxu0 0.0
    %2082 = vmatpush1.msra.mxu0 0.0
    %2083 = vmatprep.subr.mxu0 0.0
    %2084 = vmatpush1.msra.mxu0 0.0
    %2085 = vmatprep.subr.mxu0 0.0
    %2086 = vmatpush1.msra.mxu0 0.0
    %2087 = vmatprep.subr.mxu0 0.0
    %2088 = vmatpush1.msra.mxu0 0.0
    %2089 = vmatprep.subr.mxu0 0.0
    %2090 = vmatpush1.msra.mxu0 0.0
    %2091 = vmatprep.subr.mxu0 0.0
    %2092 = vmatpush1.msra.mxu0 0.0
    %2093 = vmatprep.subr.mxu0 0.0
    %2094 = vmatpush1.msra.mxu0 0.0
    %2095 = vmatprep.subr.mxu0 0.0
    %2096 = vmatpush1.msra.mxu0 0.0
    %2097 = vmatprep.subr.mxu0 0.0
    %2098 = vmatpush1.msra.mxu0 0.0
    %2099 = vmatprep.subr.mxu0 0.0
    %2100 = vmatpush1.msra.mxu0 0.0
    %2101 = vmatprep.subr.mxu0 0.0
    %2102 = vmatpush1.msra.mxu0 0.0
    %2103 = vmatprep.subr.mxu0 0.0
    %2104 = vmatpush1.msra.mxu0 0.0
    %2105 = vmatprep.subr.mxu0 0.0
    %2106 = vmatpush1.msra.mxu0 0.0
    %2107 = vmatprep.subr.mxu0 0.0
    %2108 = vmatpush1.msra.mxu0 0.0
    %2109 = vmatprep.subr.mxu0 0.0
    %2110 = vmatpush1.msra.mxu0 0.0
    %2111 = vmatprep.subr.mxu0 0.0
    %2112 = vmatpush1.msra.mxu0 0.0
    %2113 = vmatprep.subr.mxu0 0.0
    %2114 = vmatpush1.msra.mxu0 0.0
    %2115 = vmatprep.subr.mxu0 0.0
    %2116 = vmatpush1.msra.mxu0 0.0
    %2117 = vmatprep.subr.mxu0 0.0
    %2118 = vmatpush1.msra.mxu0 0.0
    %2119 = vmatprep.mubr.f32.mxu0 0.0
    %2120 = vmatmul.mubr.f32.gmra.mrb[0].mxu0 %v2053
    %v2121 = vpop.f32.mrb[0].mxu0
    %v2122 = vadd.f32 0.0, %v2121
    %v2123 = vpop.f32.mrb[0].mxu0
    %v2124 = vadd.f32 0.0, %v2123
    %2125 = vdwg.mxu0
    %2126 = vmatprep.subr.mxu0 0.0
    %2127 = vmatpush1.msra.mxu0 %v71
    %2128 = vmatprep.subr.mxu0 0.0
    %2129 = vmatpush1.msra.mxu0 %v74
    %2130 = vmatprep.subr.mxu0 0.0
    %2131 = vmatpush1.msra.mxu0 %v77
    %2132 = vmatprep.subr.mxu0 0.0
    %2133 = vmatpush1.msra.mxu0 %v80
    %2134 = vmatprep.subr.mxu0 0.0
    %2135 = vmatpush1.msra.mxu0 0.0
    %2136 = vmatprep.subr.mxu0 0.0
    %2137 = vmatpush1.msra.mxu0 0.0
    %2138 = vmatprep.subr.mxu0 0.0
    %2139 = vmatpush1.msra.mxu0 0.0
    %2140 = vmatprep.subr.mxu0 0.0
    %2141 = vmatpush1.msra.mxu0 0.0
    %2142 = vmatprep.subr.mxu0 0.0
    %2143 = vmatpush1.msra.mxu0 0.0
    %2144 = vmatprep.subr.mxu0 0.0
    %2145 = vmatpush1.msra.mxu0 0.0
    %2146 = vmatprep.subr.mxu0 0.0
    %2147 = vmatpush1.msra.mxu0 0.0
    %2148 = vmatprep.subr.mxu0 0.0
    %2149 = vmatpush1.msra.mxu0 0.0
    %2150 = vmatprep.subr.mxu0 0.0
    %2151 = vmatpush1.msra.mxu0 0.0
    %2152 = vmatprep.subr.mxu0 0.0
    %2153 = vmatpush1.msra.mxu0 0.0
    %2154 = vmatprep.subr.mxu0 0.0
    %2155 = vmatpush1.msra.mxu0 0.0
    %2156 = vmatprep.subr.mxu0 0.0
    %2157 = vmatpush1.msra.mxu0 0.0
    %2158 = vmatprep.subr.mxu0 0.0
    %2159 = vmatpush1.msra.mxu0 0.0
    %2160 = vmatprep.subr.mxu0 0.0
    %2161 = vmatpush1.msra.mxu0 0.0
    %2162 = vmatprep.subr.mxu0 0.0
    %2163 = vmatpush1.msra.mxu0 0.0
    %2164 = vmatprep.subr.mxu0 0.0
    %2165 = vmatpush1.msra.mxu0 0.0
    %2166 = vmatprep.subr.mxu0 0.0
    %2167 = vmatpush1.msra.mxu0 0.0
    %2168 = vmatprep.subr.mxu0 0.0
    %2169 = vmatpush1.msra.mxu0 0.0
    %2170 = vmatprep.subr.mxu0 0.0
    %2171 = vmatpush1.msra.mxu0 0.0
    %2172 = vmatprep.subr.mxu0 0.0
    %2173 = vmatpush1.msra.mxu0 0.0
    %2174 = vmatprep.subr.mxu0 0.0
    %2175 = vmatpush1.msra.mxu0 0.0
    %2176 = vmatprep.subr.mxu0 0.0
    %2177 = vmatpush1.msra.mxu0 0.0
    %2178 = vmatprep.subr.mxu0 0.0
    %2179 = vmatpush1.msra.mxu0 0.0
    %2180 = vmatprep.subr.mxu0 0.0
    %2181 = vmatpush1.msra.mxu0 0.0
    %2182 = vmatprep.subr.mxu0 0.0
    %2183 = vmatpush1.msra.mxu0 0.0
    %2184 = vmatprep.subr.mxu0 0.0
    %2185 = vmatpush1.msra.mxu0 0.0
    %2186 = vmatprep.subr.mxu0 0.0
    %2187 = vmatpush1.msra.mxu0 0.0
    %2188 = vmatprep.subr.mxu0 0.0
    %2189 = vmatpush1.msra.mxu0 0.0
    %2190 = vmatprep.mubr.f32.mxu0 0.0
    %2191 = vmatmul.mubr.f32.gmra.mrb[0].mxu0 %v2053
    %v2192 = vpop.f32.mrb[0].mxu0
    %v2193 = vadd.f32 0.0, %v2192
    %v2194 = vpop.f32.mrb[0].mxu0
    %2195 = vdwg.mxu0
    %v2196 = vadd.f32 %v2020, %v2193
    %v2197 = vadd.f32 %v2196, %v101
    %v2198 = vadd.f32 %v2022, %v2124
    %v2199 = vadd.f32 %v2198, %v94
    %v2200 = vadd.f32 %v2199, %v2122
    %v2201 = vxor.u32 %v2200, 2147483648
    %v2202 = vmul.f32 %v2201, 1.442695
    %v2203 = vpow.pop %v2202
    %v2204 = vadd.f32 %v2203, 1.0
    %v2205 = vrcp.pop %v2204
    %v2206 = vmul.f32 1.0, %v2205
    %v2207 = vadd.f32 %v2122, %v354
    %2209 = vrot.lane.b32.xlu0 %v2207, 64
    %v2210 = vpop.permute.xlu0 %2209
    %v2212 = vmul.f32 %v2206, %v2210
    %2214 = vrot.lane.b32.xlu0 %v2212, 64
    %v2215 = vpop.permute.xlu0 %2214
    %v2217 = vadd.f32 %v2199, %v2215
    %v2218 = vtanh.pop %v2217
    %v2219 = vsub.f32 1.0, %v2206
    %2221 = vrot.lane.b32.xlu0 %v2218, 96
    %v2222 = vpop.permute.xlu0 %2221
    %v2224 = vmul.f32 %v2219, %v2222
    %v2225 = vmul.f32 %v2206, %v2049
    %v2226 = vadd.f32 %v2224, %v2225
    %2228 = vrot.lane.b32.xlu0 %v2226, 96
    %v2229 = vpop.permute.xlu0 %2228
    %v2230 = vsel %vm273, %v2229, 0
    %2232 = vmatprep.subr.mxu0 0.0
    %2233 = vmatpush1.msra.mxu0 %v71
    %2234 = vmatprep.subr.mxu0 0.0
    %2235 = vmatpush1.msra.mxu0 %v74
    %2236 = vmatprep.subr.mxu0 0.0
    %2237 = vmatpush1.msra.mxu0 %v77
    %2238 = vmatprep.subr.mxu0 0.0
    %2239 = vmatpush1.msra.mxu0 %v80
    %2240 = vmatprep.subr.mxu0 0.0
    %2241 = vmatpush1.msra.mxu0 0.0
    %2242 = vmatprep.subr.mxu0 0.0
    %2243 = vmatpush1.msra.mxu0 0.0
    %2244 = vmatprep.subr.mxu0 0.0
    %2245 = vmatpush1.msra.mxu0 0.0
    %2246 = vmatprep.subr.mxu0 0.0
    %2247 = vmatpush1.msra.mxu0 0.0
    %2248 = vmatprep.subr.mxu0 0.0
    %2249 = vmatpush1.msra.mxu0 0.0
    %2250 = vmatprep.subr.mxu0 0.0
    %2251 = vmatpush1.msra.mxu0 0.0
    %2252 = vmatprep.subr.mxu0 0.0
    %2253 = vmatpush1.msra.mxu0 0.0
    %2254 = vmatprep.subr.mxu0 0.0
    %2255 = vmatpush1.msra.mxu0 0.0
    %2256 = vmatprep.subr.mxu0 0.0
    %2257 = vmatpush1.msra.mxu0 0.0
    %2258 = vmatprep.subr.mxu0 0.0
    %2259 = vmatpush1.msra.mxu0 0.0
    %2260 = vmatprep.subr.mxu0 0.0
    %2261 = vmatpush1.msra.mxu0 0.0
    %2262 = vmatprep.subr.mxu0 0.0
    %2263 = vmatpush1.msra.mxu0 0.0
    %2264 = vmatprep.subr.mxu0 0.0
    %2265 = vmatpush1.msra.mxu0 0.0
    %2266 = vmatprep.subr.mxu0 0.0
    %2267 = vmatpush1.msra.mxu0 0.0
    %2268 = vmatprep.subr.mxu0 0.0
    %2269 = vmatpush1.msra.mxu0 0.0
    %2270 = vmatprep.subr.mxu0 0.0
    %2271 = vmatpush1.msra.mxu0 0.0
    %2272 = vmatprep.subr.mxu0 0.0
    %2273 = vmatpush1.msra.mxu0 0.0
    %2274 = vmatprep.subr.mxu0 0.0
    %2275 = vmatpush1.msra.mxu0 0.0
    %2276 = vmatprep.subr.mxu0 0.0
    %2277 = vmatpush1.msra.mxu0 0.0
    %2278 = vmatprep.subr.mxu0 0.0
    %2279 = vmatpush1.msra.mxu0 0.0
    %2280 = vmatprep.subr.mxu0 0.0
    %2281 = vmatpush1.msra.mxu0 0.0
    %2282 = vmatprep.subr.mxu0 0.0
    %2283 = vmatpush1.msra.mxu0 0.0
    %2284 = vmatprep.subr.mxu0 0.0
    %2285 = vmatpush1.msra.mxu0 0.0
    %2286 = vmatprep.subr.mxu0 0.0
    %2287 = vmatpush1.msra.mxu0 0.0
    %2288 = vmatprep.subr.mxu0 0.0
    %2289 = vmatpush1.msra.mxu0 0.0
    %2290 = vmatprep.subr.mxu0 0.0
    %2291 = vmatpush1.msra.mxu0 0.0
    %2292 = vmatprep.subr.mxu0 0.0
    %2293 = vmatpush1.msra.mxu0 0.0
    %2294 = vmatprep.subr.mxu0 0.0
    %2295 = vmatpush1.msra.mxu0 0.0
    %2296 = vmatprep.mubr.f32.mxu0 0.0
    %2297 = vmatmul.mubr.f32.gmra.mrb[0].mxu0 %v2230
    %v2298 = vpop.f32.mrb[0].mxu0
    %v2299 = vadd.f32 0.0, %v2298
    %v2300 = vpop.f32.mrb[0].mxu0
    %2301 = vdwg.mxu0
    %v2302 = vadd.f32 %v2197, %v2299
    %v2303 = vadd.f32 %v2302, %v101
    %v2305 = vrot.slane %v1312, 6
    %v2308 = vrot.slane %v1489, 4
    %v2311 = vrot.slane %v1666, 2
    %v2314 = vrot.slane %v2020, 6
    %v2317 = vrot.slane %v2197, 4
    %v2320 = vrot.slane %v2303, 2
    %vm2322 = vcmask 1041408
    %v2323 = vsel %vm2322, %v1135, %v2305
    %vm2324 = vcmask 1043456
    %v2325 = vsel %vm2324, %v2323, %v2308
    %vm2326 = vcmask 1045504
    %v2327 = vsel %vm2326, %v2325, %v2311
    %v2328 = vsel %vm2322, %v1843, %v2314
    %v2329 = vsel %vm2324, %v2328, %v2317
    %v2330 = vsel %vm2326, %v2329, %v2320
    %2331 = vst.msk [vmem:[%s8] sm:$0xff] %vm117, %v2327
    %2332 = vst.msk [vmem:[%s8 + $0x8] sm:$0xff] %vm117, %v2330
    // Predicated region
    $region42: #{motion_predictor_forward.1} parent=1 // pred_check
      _
    $region43: #{motion_predictor_forward.1} parent=1 // pred_check_branch
      %2334 = sbr.rel (0) target = $region45
    $region44: #{motion_predictor_forward.1} parent=1 // pred_region
      _
    $region45: #{motion_predictor_forward.1} parent=1 // pred_fallthru
      _
    // Predicated region
    $region46: #{motion_predictor_forward.1} parent=1 // pred_check
      _
    $region47: #{motion_predictor_forward.1} parent=1 // pred_check_branch
      %2336 = sbr.rel (0) target = $region49
    $region48: #{motion_predictor_forward.1} parent=1 // pred_region
      _
    $region49: #{motion_predictor_forward.1} parent=1 // pred_fallthru
      _
    %2337 = vsyncpa [#allocation3], 1
    %2338 = vsyncpa [#allocation5], 1

</llo_original>
